<compile_context>
chip_gen: v6e
topology: v6e:2x2x1
jax: 0.10.0
libtpu: 0.0.40
codegen_flags: <defaults>
</compile_context>

<pallas_src>
import functools

import jax
import jax.numpy as jnp
from jax import lax
from jax.experimental import pallas as pl
from jax.experimental.pallas import tpu as pltpu


_INV_SQRT2 = 0.7071067811865476
_TM_CANDIDATES = (1024, 768, 512, 384, 256, 128, 64, 32, 16, 8)


def _round_up(x, m):
    return ((x + m - 1) // m) * m


def _min_sublane(dtype):
    # f32 -> 8, bf16 -> 16, int8/fp8 -> 32 (sublane packing minimums).
    return max(8, 32 // jnp.dtype(dtype).itemsize)


def _gelu_exact_f32(x):
    # nn.GELU default (approximate='none'): 0.5 * x * (1 + erf(x / sqrt(2))).
    return 0.5 * x * (1.0 + lax.erf(x * _INV_SQRT2))


# ----------------------------------------------------------------------------
# Kernels
# ----------------------------------------------------------------------------
def _mlp_kernel_resident(x_ref, w1_ref, b1_ref, w2_ref, b2_ref, o_ref):
    # grid = (token tiles,); weights are whole-array blocks, fetched once.
    h = jnp.dot(x_ref[...], w1_ref[...], preferred_element_type=jnp.float32)
    h = _gelu_exact_f32(h + b1_ref[...].astype(jnp.float32))
    y = jnp.dot(h.astype(w2_ref.dtype), w2_ref[...],
                preferred_element_type=jnp.float32)
    o_ref[...] = (y + b2_ref[...].astype(jnp.float32)).astype(o_ref.dtype)


def _mlp_kernel_stream_f32out(x_ref, w1_ref, b1_ref, w2_ref, b2_ref, o_ref):
    # grid = (token tiles, hidden slabs); f32 output is the accumulator itself
    # (its block index is constant across j, so it stays VMEM-resident).
    j = pl.program_id(1)

    @pl.when(j == 0)
    def _init():
        o_ref[...] = jnp.zeros_like(o_ref)

    h = jnp.dot(x_ref[...], w1_ref[...], preferred_element_type=jnp.float32)
    h = _gelu_exact_f32(h + b1_ref[...].astype(jnp.float32))
    o_ref[...] += jnp.dot(h.astype(w2_ref.dtype), w2_ref[...],
                          preferred_element_type=jnp.float32)

    @pl.when(j == pl.num_programs(1) - 1)
    def _finalize():
        o_ref[...] += b2_ref[...].astype(jnp.float32)


def _mlp_kernel_stream_scratch(x_ref, w1_ref, b1_ref, w2_ref, b2_ref, o_ref,
                               acc_ref):
    # Same as above but with an explicit f32 accumulator for non-f32 outputs.
    j = pl.program_id(1)

    @pl.when(j == 0)
    def _init():
        acc_ref[...] = jnp.zeros_like(acc_ref)

    h = jnp.dot(x_ref[...], w1_ref[...], preferred_element_type=jnp.float32)
    h = _gelu_exact_f32(h + b1_ref[...].astype(jnp.float32))
    acc_ref[...] += jnp.dot(h.astype(w2_ref.dtype), w2_ref[...],
                            preferred_element_type=jnp.float32)

    @pl.when(j == pl.num_programs(1) - 1)
    def _finalize():
        o_ref[...] = (acc_ref[...]
                      + b2_ref[...].astype(jnp.float32)).astype(o_ref.dtype)


# ----------------------------------------------------------------------------
# VMEM budgeting / tile selection
# ----------------------------------------------------------------------------
def _vmem_capacity_bytes():
    try:
        return int(pltpu.get_tpu_info().vmem_capacity_bytes)
    except Exception:
        return 64 * 1024 * 1024  # conservative: v7x per-TensorCore VMEM


def _vmem_resident(tm, d_in, h_pad, d_out, a_bytes, w_bytes):
    weights = (d_in * h_pad + h_pad + h_pad * d_out + d_out) * w_bytes
    return (2 * tm * d_in * a_bytes        # x tile (double-buffered)
            + 2 * tm * d_out * a_bytes     # out tile (double-buffered)
            + 2 * weights                  # conservative: weights double-buffered
            + tm * h_pad * (4 + w_bytes))  # f32 GELU temp + cast copy


def _vmem_stream(tm, th, d_in, d_out, a_bytes, w_bytes, out_is_f32):
    return (2 * tm * d_in * a_bytes
            + 2 * tm * d_out * a_bytes
            + 2 * (d_in * th + th) * w_bytes   # w1/b1 slabs
            + 2 * th * d_out * w_bytes         # w2 slab
            + d_out * w_bytes                  # b2
            + (0 if out_is_f32 else tm * d_out * 4)
            + tm * th * (4 + w_bytes))         # GELU temp


def _pick_tiles(m, d_in, d_hidden, d_out, a_bytes, w_bytes, out_is_f32,
                vmem_cap, min_sub, tm_req, th_req):
    h_pad128 = _round_up(d_hidden, 128)
    budget = int(0.8 * vmem_cap)          # headroom for Mosaic-internal scratch
    tm_cap = _round_up(m, min_sub)

    if tm_req is not None:
        tm_cands = [min(_round_up(tm_req, min_sub), tm_cap)]
    else:
        tm_cands = [min(c, tm_cap) for c in _TM_CANDIDATES if c >= min_sub]

    # 1) Weights-resident path: grid_h == 1, weights fetched from HBM once.
    if th_req is None or _round_up(th_req, 128) >= h_pad128:
        for tm in tm_cands:
            if _vmem_resident(tm, d_in, h_pad128, d_out,
                              a_bytes, w_bytes) <= budget:
                return tm, h_pad128, True

    # 2) Streaming path: hidden dim in 128-multiple slabs.
    if th_req is not None:
        th = min(_round_up(th_req, 128), h_pad128)
    else:
        th = next((c for c in (512, 384, 256, 128)
                   if c <= h_pad128 and h_pad128 % c == 0),
                  min(512, h_pad128))
    for tm in tm_cands:
        if _vmem_stream(tm, th, d_in, d_out, a_bytes, w_bytes,
                        out_is_f32) <= budget:
            return tm, th, False

    # Last resort: smallest reasonable tiles.
    return min(tm_cap, max(min_sub, 128)), min(128, h_pad128), False


# ----------------------------------------------------------------------------
# Pallas call (jitted, static tiling)
# ----------------------------------------------------------------------------
@functools.partial(
    jax.jit,
    static_argnames=("tm_eff", "th_eff", "resident", "single_buffer",
                     "vmem_limit"))
def _mlp_pallas(x, w1, b1, w2, b2, *, tm_eff, th_eff, resident, single_buffer,
                vmem_limit):
    orig_shape = x.shape
    d_in, h_pad = w1.shape
    d_out = w2.shape[1]
    x2d = x.reshape(-1, d_in)
    m = x2d.shape[0]
    b1_2d = b1.reshape(1, h_pad)
    b2_2d = b2.reshape(1, d_out)

    grid_m = (m + tm_eff - 1) // tm_eff
    grid_h = h_pad // th_eff
    out_is_f32 = x2d.dtype == jnp.float32

    def spec(shape, index_map, constant=False):
        # Blocks whose index never changes are fetched once; single-buffer them
        # to halve their VMEM footprint when the API supports it.
        if constant and single_buffer:
            try:
                return pl.BlockSpec(shape, index_map,
                                    pipeline_mode=pl.Buffered(1))
            except TypeError:
                pass
        return pl.BlockSpec(shape, index_map)

    if resident:
        grid = (grid_m,)
        dim_sem = ("parallel",)
        in_specs = [
            pl.BlockSpec((tm_eff, d_in), lambda i: (i, 0)),
            spec((d_in, th_eff), lambda i: (0, 0), constant=True),
            spec((1, th_eff), lambda i: (0, 0), constant=True),
            spec((th_eff, d_out), lambda i: (0, 0), constant=True),
            spec((1, d_out), lambda i: (0, 0), constant=True),
        ]
        out_specs = pl.BlockSpec((tm_eff, d_out), lambda i: (i, 0))
        scratch_shapes = ()
        kernel = _mlp_kernel_resident
    else:
        grid = (grid_m, grid_h)
        dim_sem = ("parallel", "arbitrary")
        if grid_h > 1:
            # Serpentine: odd token tiles walk the hidden axis in reverse, so
            # the boundary weight slab is reused instead of re-fetched.
            def jj(i, j):
                return j + (i % 2) * (grid_h - 1 - 2 * j)
        else:
            def jj(i, j):
                return j
        in_specs = [
            pl.BlockSpec((tm_eff, d_in), lambda i, j: (i, 0)),
            pl.BlockSpec((d_in, th_eff), lambda i, j: (0, jj(i, j))),
            pl.BlockSpec((1, th_eff), lambda i, j: (0, jj(i, j))),
            pl.BlockSpec((th_eff, d_out), lambda i, j: (jj(i, j), 0)),
            spec((1, d_out), lambda i, j: (0, 0), constant=True),
        ]
        out_specs = pl.BlockSpec((tm_eff, d_out), lambda i, j: (i, 0))
        if out_is_f32:
            scratch_shapes = ()
            kernel = _mlp_kernel_stream_f32out
        else:
            scratch_shapes = (pltpu.VMEM((tm_eff, d_out), jnp.float32),)
            kernel = _mlp_kernel_stream_scratch

    a_bytes = x2d.dtype.itemsize
    w_bytes = w1.dtype.itemsize
    weight_bytes = (d_in * h_pad + h_pad + h_pad * d_out + d_out) * w_bytes
    weight_reads = 1 if resident else grid_m   # honest DMA traffic
    flops = 2 * m * h_pad * (d_in + d_out)
    bytes_accessed = (m * d_in * a_bytes
                      + weight_reads * weight_bytes
                      + m * d_out * a_bytes)

    out = pl.pallas_call(
        kernel,
        out_shape=jax.ShapeDtypeStruct((m, d_out), x2d.dtype),
        grid_spec=pltpu.PrefetchScalarGridSpec(
            num_scalar_prefetch=0,
            grid=grid,
            in_specs=in_specs,
            out_specs=out_specs,
            scratch_shapes=scratch_shapes,
        ),
        compiler_params=pltpu.CompilerParams(
            dimension_semantics=dim_sem,
            vmem_limit_bytes=vmem_limit,
        ),
        cost_estimate=pl.CostEstimate(
            flops=flops,
            transcendentals=m * h_pad,
            bytes_accessed=bytes_accessed,
        ),
    )(x2d, w1, b1_2d, w2, b2_2d)

    return out.reshape(*orig_shape[:-1], d_out)


# ----------------------------------------------------------------------------
# Public wrapper
# ----------------------------------------------------------------------------
def mlp_forward(x, w1, b1, w2, b2, *, tm=None, th=None):
    """Fused MLP forward: fc1 -> exact GELU -> fc2 (dropout p=0 is identity).

    x: [..., in_features]; w1: [in, hidden]; w2: [hidden, out].
    tm / th optionally override the auto-selected token tile / hidden slab.
    """
    d_in, d_hidden = w1.shape
    d_out = w2.shape[1]
    m = 1
    for s in x.shape[:-1]:
        m *= int(s)

    a_bytes = jnp.dtype(x.dtype).itemsize
    w_bytes = jnp.dtype(w1.dtype).itemsize
    out_is_f32 = jnp.dtype(x.dtype) == jnp.dtype(jnp.float32)
    vmem_cap = _vmem_capacity_bytes()
    min_sub = _min_sublane(x.dtype)

    tm_eff, th_eff, resident = _pick_tiles(
        m, d_in, d_hidden, d_out, a_bytes, w_bytes, out_is_f32,
        vmem_cap, min_sub, tm, th)

    # Pad only the (cheap) weights' hidden dim so the slab divides it; zero
    # rows of w2 contribute exactly 0, so this is exact.  Done OUTSIDE the
    # jitted hot path.
    # TODO(synk): for production, pre-pad weights once at init instead of per call.
    h_pad = _round_up(_round_up(d_hidden, 128), th_eff)
    if h_pad != d_hidden:
        w1 = jnp.pad(w1, ((0, 0), (0, h_pad - d_hidden)))
        b1 = jnp.pad(b1, (0, h_pad - d_hidden))
        w2 = jnp.pad(w2, ((0, h_pad - d_hidden), (0, 0)))

    if resident:
        est = _vmem_resident(tm_eff, d_in, h_pad, d_out, a_bytes, w_bytes)
    else:
        est = _vmem_stream(tm_eff, th_eff, d_in, d_out, a_bytes, w_bytes,
                           out_is_f32)
    # Explicit scoped-VMEM request, clamped below physical VMEM (v7x: 64 MiB).
    vmem_limit = min(max(32 * 1024 * 1024, int(1.25 * est)),
                     vmem_cap - 4 * 1024 * 1024)

    kwargs = dict(tm_eff=tm_eff, th_eff=th_eff, resident=resident,
                  vmem_limit=vmem_limit)
    try:
        return _mlp_pallas(x, w1, b1, w2, b2, single_buffer=True, **kwargs)
    except Exception:
        # pl.Buffered(1) not supported by this build: fall back to the default
        # double-buffered specs (identical numerics, slightly more VMEM).
        return _mlp_pallas(x, w1, b1, w2, b2, single_buffer=False, **kwargs)


# ----------------------------------------------------------------------------
# Reference / params / demo
# ----------------------------------------------------------------------------
def init_mlp_params(key, in_features, hidden_features=None, out_features=None,
                    dtype=jnp.float32):
    """Synthetic params; PyTorch stores fc.weight as [out, in], we return the
    transposed [in, out] matrices used directly in y = x @ W + b."""
    out_features = out_features or in_features
    hidden_features = hidden_features or in_features
    k1, k2, k3, k4 = jax.random.split(key, 4)
    s1 = 1.0 / jnp.sqrt(in_features)
    s2 = 1.0 / jnp.sqrt(hidden_features)
    w1 = jax.random.normal(k1, (in_features, hidden_features), dtype) * s1
    b1 = jax.random.normal(k2, (hidden_features,), dtype) * s1
    w2 = jax.random.normal(k3, (hidden_features, out_features), dtype) * s2
    b2 = jax.random.normal(k4, (out_features,), dtype) * s2
    return w1, b1, w2, b2


def mlp_reference(x, w1, b1, w2, b2):
    h = jnp.dot(x, w1) + b1
    h = 0.5 * h * (1.0 + lax.erf(h * _INV_SQRT2))
    return jnp.dot(h, w2) + b2


if __name__ == "__main__":
    key = jax.random.PRNGKey(0)
    kx, kp = jax.random.split(key)

    batch, seq = 2, 8
    in_features, hidden_features, out_features = 256, 512, 256

    x = jax.random.normal(kx, (batch, seq, in_features), jnp.float32)
    w1, b1, w2, b2 = init_mlp_params(kp, in_features, hidden_features,
                                     out_features)
    ref = mlp_reference(x, w1, b1, w2, b2)

    # 1) Auto config: weights-resident fast path (grid_h == 1).
    out = jax.block_until_ready(mlp_forward(x, w1, b1, w2, b2))
    assert out.shape == (batch, seq, out_features), out.shape
    assert jnp.allclose(out, ref, atol=1e-4, rtol=1e-4), "resident path mismatch"

    # 2) Forced hidden-streaming path (grid_h == 2), f32 output accumulation.
    out_s = jax.block_until_ready(mlp_forward(x, w1, b1, w2, b2, th=256))
    assert jnp.allclose(out_s, ref, atol=1e-4, rtol=1e-4), "streaming path mismatch"

    # 3) bf16 streaming path (f32 scratch accumulator, 16-row sublane minimum).
    xb = x.astype(jnp.bfloat16)
    w1b, b1b, w2b, b2b = (t.astype(jnp.bfloat16) for t in (w1, b1, w2, b2))
    out_b = jax.block_until_ready(mlp_forward(xb, w1b, b1b, w2b, b2b, th=256))
    ref_b = mlp_reference(xb.astype(jnp.float32), w1b.astype(jnp.float32),
                          b1b.astype(jnp.float32), w2b.astype(jnp.float32),
                          b2b.astype(jnp.float32))
    assert out_b.shape == (batch, seq, out_features)
    assert jnp.allclose(out_b.astype(jnp.float32), ref_b,
                        atol=5e-2, rtol=5e-2), "bf16 path mismatch"

    print("KERNEL_OK")
</pallas_src>

<mosaic_0001>
module attributes {stable_mosaic.version = 11 : i64} {
  func.func @_mlp_kernel_resident(%arg0: i32, %arg1: memref<16x256xf32, #tpu.memory_space<vmem>>, %arg2: memref<256x512xf32, #tpu.memory_space<vmem>>, %arg3: memref<1x512xf32, #tpu.memory_space<vmem>>, %arg4: memref<512x256xf32, #tpu.memory_space<vmem>>, %arg5: memref<1x256xf32, #tpu.memory_space<vmem>>, %arg6: memref<16x256xf32, #tpu.memory_space<vmem>>) attributes {dimension_semantics = [#tpu.dimension_semantics<parallel>], iteration_bounds = array<i64: 1>, scalar_prefetch = 0 : i64, scratch_operands = 0 : i64, tpu.core_type = #tpu.core_type<tc>, window_params = [{transform_indices = @transform_0, window_bounds = array<i64: 16, 256>}, {pipeline_mode = #tpu.pipeline_mode<synchronous>, transform_indices = @transform_1, window_bounds = array<i64: 256, 512>}, {pipeline_mode = #tpu.pipeline_mode<synchronous>, transform_indices = @transform_2, window_bounds = array<i64: 1, 512>}, {pipeline_mode = #tpu.pipeline_mode<synchronous>, transform_indices = @transform_3, window_bounds = array<i64: 512, 256>}, {pipeline_mode = #tpu.pipeline_mode<synchronous>, transform_indices = @transform_4, window_bounds = array<i64: 1, 256>}, {transform_indices = @transform_5, window_bounds = array<i64: 16, 256>}]} {
    %c0 = arith.constant 0 : index
    %c0_0 = arith.constant 0 : index
    %0 = vector.load %arg1[%c0, %c0_0] : memref<16x256xf32, #tpu.memory_space<vmem>>, vector<16x256xf32>
    %c0_1 = arith.constant 0 : index
    %c0_2 = arith.constant 0 : index
    %1 = vector.load %arg2[%c0_1, %c0_2] : memref<256x512xf32, #tpu.memory_space<vmem>>, vector<256x512xf32>
    %cst = arith.constant dense<0.000000e+00> : vector<16x512xf32>
    %2 = tpu.matmul %0, %1, %cst {dimension_numbers = #tpu.dot_dimension_numbers<[1], [0], [0], [1], [0, 0, 1, 1], [], []>} : vector<16x256xf32>, vector<256x512xf32>, vector<16x512xf32> -> vector<16x512xf32>
    %c0_3 = arith.constant 0 : index
    %c0_4 = arith.constant 0 : index
    %3 = vector.load %arg3[%c0_3, %c0_4] : memref<1x512xf32, #tpu.memory_space<vmem>>, vector<1x512xf32>
    %4 = vector.broadcast %3 : vector<1x512xf32> to vector<16x512xf32>
    %5 = arith.addf %2, %4 : vector<16x512xf32>
    %cst_5 = arith.constant 5.000000e-01 : f32
    %6 = vector.broadcast %cst_5 : f32 to vector<16x512xf32>
    %7 = arith.mulf %6, %5 : vector<16x512xf32>
    %cst_6 = arith.constant 0.707106769 : f32
    %8 = vector.broadcast %cst_6 : f32 to vector<16x512xf32>
    %9 = arith.mulf %5, %8 : vector<16x512xf32>
    %10 = math.erf %9 : vector<16x512xf32>
    %cst_7 = arith.constant 1.000000e+00 : f32
    %11 = vector.broadcast %cst_7 : f32 to vector<16x512xf32>
    %12 = arith.addf %11, %10 : vector<16x512xf32>
    %13 = arith.mulf %7, %12 : vector<16x512xf32>
    %c0_8 = arith.constant 0 : index
    %c0_9 = arith.constant 0 : index
    %14 = vector.load %arg4[%c0_8, %c0_9] : memref<512x256xf32, #tpu.memory_space<vmem>>, vector<512x256xf32>
    %cst_10 = arith.constant dense<0.000000e+00> : vector<16x256xf32>
    %15 = tpu.matmul %13, %14, %cst_10 {dimension_numbers = #tpu.dot_dimension_numbers<[1], [0], [0], [1], [0, 0, 1, 1], [], []>} : vector<16x512xf32>, vector<512x256xf32>, vector<16x256xf32> -> vector<16x256xf32>
    %c0_11 = arith.constant 0 : index
    %c0_12 = arith.constant 0 : index
    %16 = vector.load %arg5[%c0_11, %c0_12] : memref<1x256xf32, #tpu.memory_space<vmem>>, vector<1x256xf32>
    %17 = vector.broadcast %16 : vector<1x256xf32> to vector<16x256xf32>
    %18 = arith.addf %15, %17 : vector<16x256xf32>
    %c0_13 = arith.constant 0 : index
    %c0_14 = arith.constant 0 : index
    %19 = vector.load %arg6[%c0_13, %c0_14] : memref<16x256xf32, #tpu.memory_space<vmem>>, vector<16x256xf32>
    tpu.vector_store %arg6[%c0_13, %c0_14], %18 {strides = array<i32>} : memref<16x256xf32, #tpu.memory_space<vmem>>, vector<16x256xf32>,
    return
  }
  func.func @transform_0(%arg0: i32) -> (i32, i32) {
    %c0_i32 = arith.constant 0 : i32
    %c0_i32_0 = arith.constant 0 : i32
    return %arg0, %c0_i32 : i32, i32
  }
  func.func @transform_1(%arg0: i32) -> (i32, i32) {
    %c0_i32 = arith.constant 0 : i32
    %c0_i32_0 = arith.constant 0 : i32
    %c0_i32_1 = arith.constant 0 : i32
    return %c0_i32, %c0_i32_0 : i32, i32
  }
  func.func @transform_2(%arg0: i32) -> (i32, i32) {
    %c0_i32 = arith.constant 0 : i32
    %c0_i32_0 = arith.constant 0 : i32
    %c0_i32_1 = arith.constant 0 : i32
    return %c0_i32, %c0_i32_0 : i32, i32
  }
  func.func @transform_3(%arg0: i32) -> (i32, i32) {
    %c0_i32 = arith.constant 0 : i32
    %c0_i32_0 = arith.constant 0 : i32
    %c0_i32_1 = arith.constant 0 : i32
    return %c0_i32, %c0_i32_0 : i32, i32
  }
  func.func @transform_4(%arg0: i32) -> (i32, i32) {
    %c0_i32 = arith.constant 0 : i32
    %c0_i32_0 = arith.constant 0 : i32
    %c0_i32_1 = arith.constant 0 : i32
    return %c0_i32, %c0_i32_0 : i32, i32
  }
  func.func @transform_5(%arg0: i32) -> (i32, i32) {
    %c0_i32 = arith.constant 0 : i32
    %c0_i32_0 = arith.constant 0 : i32
    return %arg0, %c0_i32 : i32, i32
  }
}

module attributes {stable_mosaic.version = 11 : i64} {
  func.func @_mlp_kernel_resident(%arg0: i32, %arg1: memref<16x256xf32, #tpu.memory_space<vmem>>, %arg2: memref<256x512xf32, #tpu.memory_space<vmem>>, %arg3: memref<1x512xf32, #tpu.memory_space<vmem>>, %arg4: memref<512x256xf32, #tpu.memory_space<vmem>>, %arg5: memref<1x256xf32, #tpu.memory_space<vmem>>, %arg6: memref<16x256xf32, #tpu.memory_space<vmem>>) attributes {dimension_semantics = [#tpu.dimension_semantics<parallel>], iteration_bounds = array<i64: 1>, scalar_prefetch = 0 : i64, scratch_operands = 0 : i64, tpu.core_type = #tpu.core_type<tc>, window_params = [{transform_indices = @transform_0, window_bounds = array<i64: 16, 256>}, {pipeline_mode = #tpu.pipeline_mode<synchronous>, transform_indices = @transform_1, window_bounds = array<i64: 256, 512>}, {pipeline_mode = #tpu.pipeline_mode<synchronous>, transform_indices = @transform_2, window_bounds = array<i64: 1, 512>}, {pipeline_mode = #tpu.pipeline_mode<synchronous>, transform_indices = @transform_3, window_bounds = array<i64: 512, 256>}, {pipeline_mode = #tpu.pipeline_mode<synchronous>, transform_indices = @transform_4, window_bounds = array<i64: 1, 256>}, {transform_indices = @transform_5, window_bounds = array<i64: 16, 256>}]} {
    %c0 = arith.constant 0 : index
    %c0_0 = arith.constant 0 : index
    %0 = vector.load %arg1[%c0, %c0_0] : memref<16x256xf32, #tpu.memory_space<vmem>>, vector<16x256xf32>
    %c0_1 = arith.constant 0 : index
    %c0_2 = arith.constant 0 : index
    %1 = vector.load %arg2[%c0_1, %c0_2] : memref<256x512xf32, #tpu.memory_space<vmem>>, vector<256x512xf32>
    %cst = arith.constant dense<0.000000e+00> : vector<16x512xf32>
    %2 = tpu.matmul %0, %1, %cst {dimension_numbers = #tpu.dot_dimension_numbers<[1], [0], [0], [1], [0, 0, 1, 1], [], []>} : vector<16x256xf32>, vector<256x512xf32>, vector<16x512xf32> -> vector<16x512xf32>
    %c0_3 = arith.constant 0 : index
    %c0_4 = arith.constant 0 : index
    %3 = vector.load %arg3[%c0_3, %c0_4] : memref<1x512xf32, #tpu.memory_space<vmem>>, vector<1x512xf32>
    %4 = vector.broadcast %3 : vector<1x512xf32> to vector<16x512xf32>
    %5 = arith.addf %2, %4 : vector<16x512xf32>
    %cst_5 = arith.constant 5.000000e-01 : f32
    %6 = vector.broadcast %cst_5 : f32 to vector<16x512xf32>
    %7 = arith.mulf %6, %5 : vector<16x512xf32>
    %cst_6 = arith.constant 0.707106769 : f32
    %8 = vector.broadcast %cst_6 : f32 to vector<16x512xf32>
    %9 = arith.mulf %5, %8 : vector<16x512xf32>
    %10 = math.erf %9 : vector<16x512xf32>
    %cst_7 = arith.constant 1.000000e+00 : f32
    %11 = vector.broadcast %cst_7 : f32 to vector<16x512xf32>
    %12 = arith.addf %11, %10 : vector<16x512xf32>
    %13 = arith.mulf %7, %12 : vector<16x512xf32>
    %c0_8 = arith.constant 0 : index
    %c0_9 = arith.constant 0 : index
    %14 = vector.load %arg4[%c0_8, %c0_9] : memref<512x256xf32, #tpu.memory_space<vmem>>, vector<512x256xf32>
    %cst_10 = arith.constant dense<0.000000e+00> : vector<16x256xf32>
    %15 = tpu.matmul %13, %14, %cst_10 {dimension_numbers = #tpu.dot_dimension_numbers<[1], [0], [0], [1], [0, 0, 1, 1], [], []>} : vector<16x512xf32>, vector<512x256xf32>, vector<16x256xf32> -> vector<16x256xf32>
    %c0_11 = arith.constant 0 : index
    %c0_12 = arith.constant 0 : index
    %16 = vector.load %arg5[%c0_11, %c0_12] : memref<1x256xf32, #tpu.memory_space<vmem>>, vector<1x256xf32>
    %17 = vector.broadcast %16 : vector<1x256xf32> to vector<16x256xf32>
    %18 = arith.addf %15, %17 : vector<16x256xf32>
    %c0_13 = arith.constant 0 : index
    %c0_14 = arith.constant 0 : index
    %19 = vector.load %arg6[%c0_13, %c0_14] : memref<16x256xf32, #tpu.memory_space<vmem>>, vector<16x256xf32>
    tpu.vector_store %arg6[%c0_13, %c0_14], %18 {strides = array<i32>} : memref<16x256xf32, #tpu.memory_space<vmem>>, vector<16x256xf32>,
    return
  }
  func.func @transform_0(%arg0: i32) -> (i32, i32) {
    %c0_i32 = arith.constant 0 : i32
    %c0_i32_0 = arith.constant 0 : i32
    return %arg0, %c0_i32 : i32, i32
  }
  func.func @transform_1(%arg0: i32) -> (i32, i32) {
    %c0_i32 = arith.constant 0 : i32
    %c0_i32_0 = arith.constant 0 : i32
    %c0_i32_1 = arith.constant 0 : i32
    return %c0_i32, %c0_i32_0 : i32, i32
  }
  func.func @transform_2(%arg0: i32) -> (i32, i32) {
    %c0_i32 = arith.constant 0 : i32
    %c0_i32_0 = arith.constant 0 : i32
    %c0_i32_1 = arith.constant 0 : i32
    return %c0_i32, %c0_i32_0 : i32, i32
  }
  func.func @transform_3(%arg0: i32) -> (i32, i32) {
    %c0_i32 = arith.constant 0 : i32
    %c0_i32_0 = arith.constant 0 : i32
    %c0_i32_1 = arith.constant 0 : i32
    return %c0_i32, %c0_i32_0 : i32, i32
  }
  func.func @transform_4(%arg0: i32) -> (i32, i32) {
    %c0_i32 = arith.constant 0 : i32
    %c0_i32_0 = arith.constant 0 : i32
    %c0_i32_1 = arith.constant 0 : i32
    return %c0_i32, %c0_i32_0 : i32, i32
  }
  func.func @transform_5(%arg0: i32) -> (i32, i32) {
    %c0_i32 = arith.constant 0 : i32
    %c0_i32_0 = arith.constant 0 : i32
    return %arg0, %c0_i32 : i32, i32
  }
}

</mosaic_0001>

<llo_original>
// kernel: _mlp_pallas.1
$region0: #{_mlp_pallas.1}
  #allocation0 [shape = 'u32[]', space=smem, size = 0x4, offset = 0x4, fixed_abs, tag = 'smem constant byte address 0x4 - core index']
  #allocation1 [shape = 'u32[144,128]{1,0:T(1,128)}', space=vmem, size = 0x12000, scoped, tag = 'internal scratch']
  %s0 = inlined_call_operand.hbm [shape: f32[16,256], index: 0, kind: input, shape index: {}]
  %s1 = inlined_call_operand.hbm [shape: f32[256,512], index: 1, kind: input, shape index: {}]
  %s2 = inlined_call_operand.vmem [shape: f32[1,512], index: 2, kind: input, shape index: {}]
  %s3 = inlined_call_operand.hbm [shape: f32[512,256], index: 3, kind: input, shape index: {}]
  %s4 = inlined_call_operand.vmem [shape: f32[1,256], index: 4, kind: input, shape index: {}]
  %s5 = inlined_call_operand.hbm [shape: f32[16,256], index: 5, kind: output, shape index: {}]
  %s6 = sld [smem:[#allocation0]]
  $region42: #{_mlp_pallas.1} parent=0
    _
  %s8 = ssub.s32 1, %s6
  %s9 = scalar_select 0, %s8, %s6
  $region1: #{_mlp_pallas.1} parent=0
    #allocation2 [shape = 'u8[16384]{0}', space=vmem, size = 0x4000, scoped, tag = 'input window, operand 0, single buffered']
    #allocation3 [shape = 's32[1]{0}', space=sflag, size = 0x4, scoped, tag = 'scoped memory for _mlp_pallas.1']
    #allocation4 [shape = 's32[1]{0}', space=sflag, size = 0x4, scoped, tag = 'scoped memory for _mlp_pallas.1']
    #allocation5 [shape = 'u8[524288]{0}', space=vmem, size = 0x80000, scoped, tag = 'input window, operand 1, single buffered']
    #allocation6 [shape = 's32[1]{0}', space=sflag, size = 0x4, scoped, tag = 'scoped memory for _mlp_pallas.1']
    #allocation7 [shape = 'u8[524288]{0}', space=vmem, size = 0x80000, scoped, tag = 'input window, operand 3, single buffered']
    #allocation8 [shape = 'u8[16384]{0}', space=vmem, size = 0x4000, scoped, tag = 'output window, operand 0, single buffered']
    %10 = vsyncpa [#allocation3], 0
    %11 = vsyncpa [#allocation6], 0
    %12 = vsyncpa [#allocation4], 0
    // Predicated region
    $region2: #{_mlp_pallas.1} parent=1 // pred_check
      _
    $region3: #{_mlp_pallas.1} parent=1 // pred_check_branch
      %14 = sbr.rel (0) target = $region5
    $region4: #{_mlp_pallas.1} parent=1 // pred_region
      %s16 = ssub.s32 512, 512
      %17 = vsyncadd [#allocation3], %s16
      %s18 = sshll.u32 [#allocation2], 4
      %s19 = int_to_ptr.vmem [resolvable:$true] %s18
      %24 = dma.hbm_to_vmem [thread:$0]  %s0, 512, %s19, [#allocation3], 256, 256, 16
    $region5: #{_mlp_pallas.1} parent=1 // pred_fallthru
      _
    // Predicated region
    $region6: #{_mlp_pallas.1} parent=1 // pred_check
      _
    $region7: #{_mlp_pallas.1} parent=1 // pred_check_branch
      %26 = sbr.rel (0) target = $region9
    $region8: #{_mlp_pallas.1} parent=1 // pred_region
      %s28 = ssub.s32 16384, 16384
      %29 = vsyncadd [#allocation6], %s28
      %s30 = sshll.u32 [#allocation5], 4
      %s31 = int_to_ptr.vmem [resolvable:$true] %s30
      %36 = dma.hbm_to_vmem [thread:$0]  %s1, 16384, %s31, [#allocation6], 512, 512, 32
    $region9: #{_mlp_pallas.1} parent=1 // pred_fallthru
      _
    // Predicated region
    $region10: #{_mlp_pallas.1} parent=1 // pred_check
      _
    $region11: #{_mlp_pallas.1} parent=1 // pred_check_branch
      %38 = sbr.rel (0) target = $region13
    $region12: #{_mlp_pallas.1} parent=1 // pred_region
      _
    $region13: #{_mlp_pallas.1} parent=1 // pred_fallthru
      _
    // Predicated region
    $region14: #{_mlp_pallas.1} parent=1 // pred_check
      _
    $region15: #{_mlp_pallas.1} parent=1 // pred_check_branch
      %40 = sbr.rel (0) target = $region17
    $region16: #{_mlp_pallas.1} parent=1 // pred_region
      %s42 = ssub.s32 16384, 16384
      %43 = vsyncadd [#allocation6], %s42
      %s44 = sshll.u32 [#allocation7], 4
      %s45 = int_to_ptr.vmem [resolvable:$true] %s44
      %50 = dma.hbm_to_vmem [thread:$0]  %s3, 16384, %s45, [#allocation6], 256, 256, 16
    $region17: #{_mlp_pallas.1} parent=1 // pred_fallthru
      _
    // Predicated region
    $region18: #{_mlp_pallas.1} parent=1 // pred_check
      _
    $region19: #{_mlp_pallas.1} parent=1 // pred_check_branch
      %52 = sbr.rel (0) target = $region21
    $region20: #{_mlp_pallas.1} parent=1 // pred_region
      _
    $region21: #{_mlp_pallas.1} parent=1 // pred_fallthru
      _
    // Predicated region
    $region22: #{_mlp_pallas.1} parent=1 // pred_check
      _
    $region23: #{_mlp_pallas.1} parent=1 // pred_check_branch
      %54 = sbr.rel (0) target = $region25
    $region24: #{_mlp_pallas.1} parent=1 // pred_region
      %55 = dma.done [#allocation3], 512
    $region25: #{_mlp_pallas.1} parent=1 // pred_fallthru
      _
    // Predicated region
    $region26: #{_mlp_pallas.1} parent=1 // pred_check
      _
    $region27: #{_mlp_pallas.1} parent=1 // pred_check_branch
      %57 = sbr.rel (0) target = $region29
    $region28: #{_mlp_pallas.1} parent=1 // pred_region
      %58 = dma.done [#allocation6], 16384
    $region29: #{_mlp_pallas.1} parent=1 // pred_fallthru
      _
    // Predicated region
    $region30: #{_mlp_pallas.1} parent=1 // pred_check
      _
    $region31: #{_mlp_pallas.1} parent=1 // pred_check_branch
      %60 = sbr.rel (0) target = $region33
    $region32: #{_mlp_pallas.1} parent=1 // pred_region
      %61 = dma.done [#allocation6], 16384
    $region33: #{_mlp_pallas.1} parent=1 // pred_fallthru
      _
    %v62 = vld [vmem:[#allocation2] sm:$0xff]
    %v63 = vld [vmem:[#allocation2 + $0x8] sm:$0xff]
    %v64 = vld [vmem:[#allocation2 + $0x10] sm:$0xff]
    %v65 = vld [vmem:[#allocation2 + $0x18] sm:$0xff]
    %v66 = vld [vmem:[#allocation5] sm:$0xff]
    %v67 = vld [vmem:[#allocation5 + $0x8] sm:$0xff]
    %v68 = vld [vmem:[#allocation5 + $0x10] sm:$0xff]
    %v69 = vld [vmem:[#allocation5 + $0x18] sm:$0xff]
    %v70 = vld [vmem:[#allocation5 + $0x20] sm:$0xff]
    %v71 = vld [vmem:[#allocation5 + $0x28] sm:$0xff]
    %v72 = vld [vmem:[#allocation5 + $0x30] sm:$0xff]
    %v73 = vld [vmem:[#allocation5 + $0x38] sm:$0xff]
    %v74 = vld [vmem:[#allocation5 + $0x40] sm:$0xff]
    %v75 = vld [vmem:[#allocation5 + $0x48] sm:$0xff]
    %v76 = vld [vmem:[#allocation5 + $0x50] sm:$0xff]
    %v77 = vld [vmem:[#allocation5 + $0x58] sm:$0xff]
    %v78 = vld [vmem:[#allocation5 + $0x60] sm:$0xff]
    %v79 = vld [vmem:[#allocation5 + $0x68] sm:$0xff]
    %v80 = vld [vmem:[#allocation5 + $0x70] sm:$0xff]
    %v81 = vld [vmem:[#allocation5 + $0x78] sm:$0xff]
    %v82 = vld [vmem:[#allocation5 + $0x80] sm:$0xff]
    %v83 = vld [vmem:[#allocation5 + $0x88] sm:$0xff]
    %v84 = vld [vmem:[#allocation5 + $0x90] sm:$0xff]
    %v85 = vld [vmem:[#allocation5 + $0x98] sm:$0xff]
    %v86 = vld [vmem:[#allocation5 + $0xa0] sm:$0xff]
    %v87 = vld [vmem:[#allocation5 + $0xa8] sm:$0xff]
    %v88 = vld [vmem:[#allocation5 + $0xb0] sm:$0xff]
    %v89 = vld [vmem:[#allocation5 + $0xb8] sm:$0xff]
    %v90 = vld [vmem:[#allocation5 + $0xc0] sm:$0xff]
    %v91 = vld [vmem:[#allocation5 + $0xc8] sm:$0xff]
    %v92 = vld [vmem:[#allocation5 + $0xd0] sm:$0xff]
    %v93 = vld [vmem:[#allocation5 + $0xd8] sm:$0xff]
    %v94 = vld [vmem:[#allocation5 + $0xe0] sm:$0xff]
    %v95 = vld [vmem:[#allocation5 + $0xe8] sm:$0xff]
    %v96 = vld [vmem:[#allocation5 + $0xf0] sm:$0xff]
    %v97 = vld [vmem:[#allocation5 + $0xf8] sm:$0xff]
    %v98 = vld [vmem:[#allocation5 + $0x100] sm:$0xff]
    %v99 = vld [vmem:[#allocation5 + $0x108] sm:$0xff]
    %v100 = vld [vmem:[#allocation5 + $0x110] sm:$0xff]
    %v101 = vld [vmem:[#allocation5 + $0x118] sm:$0xff]
    %v102 = vld [vmem:[#allocation5 + $0x120] sm:$0xff]
    %v103 = vld [vmem:[#allocation5 + $0x128] sm:$0xff]
    %v104 = vld [vmem:[#allocation5 + $0x130] sm:$0xff]
    %v105 = vld [vmem:[#allocation5 + $0x138] sm:$0xff]
    %v106 = vld [vmem:[#allocation5 + $0x140] sm:$0xff]
    %v107 = vld [vmem:[#allocation5 + $0x148] sm:$0xff]
    %v108 = vld [vmem:[#allocation5 + $0x150] sm:$0xff]
    %v109 = vld [vmem:[#allocation5 + $0x158] sm:$0xff]
    %v110 = vld [vmem:[#allocation5 + $0x160] sm:$0xff]
    %v111 = vld [vmem:[#allocation5 + $0x168] sm:$0xff]
    %v112 = vld [vmem:[#allocation5 + $0x170] sm:$0xff]
    %v113 = vld [vmem:[#allocation5 + $0x178] sm:$0xff]
    %v114 = vld [vmem:[#allocation5 + $0x180] sm:$0xff]
    %v115 = vld [vmem:[#allocation5 + $0x188] sm:$0xff]
    %v116 = vld [vmem:[#allocation5 + $0x190] sm:$0xff]
    %v117 = vld [vmem:[#allocation5 + $0x198] sm:$0xff]
    %v118 = vld [vmem:[#allocation5 + $0x1a0] sm:$0xff]
    %v119 = vld [vmem:[#allocation5 + $0x1a8] sm:$0xff]
    %v120 = vld [vmem:[#allocation5 + $0x1b0] sm:$0xff]
    %v121 = vld [vmem:[#allocation5 + $0x1b8] sm:$0xff]
    %v122 = vld [vmem:[#allocation5 + $0x1c0] sm:$0xff]
    %v123 = vld [vmem:[#allocation5 + $0x1c8] sm:$0xff]
    %v124 = vld [vmem:[#allocation5 + $0x1d0] sm:$0xff]
    %v125 = vld [vmem:[#allocation5 + $0x1d8] sm:$0xff]
    %v126 = vld [vmem:[#allocation5 + $0x1e0] sm:$0xff]
    %v127 = vld [vmem:[#allocation5 + $0x1e8] sm:$0xff]
    %v128 = vld [vmem:[#allocation5 + $0x1f0] sm:$0xff]
    %v129 = vld [vmem:[#allocation5 + $0x1f8] sm:$0xff]
    %v130 = vld [vmem:[#allocation5 + $0x200] sm:$0xff]
    %v131 = vld [vmem:[#allocation5 + $0x208] sm:$0xff]
    %v132 = vld [vmem:[#allocation5 + $0x210] sm:$0xff]
    %v133 = vld [vmem:[#allocation5 + $0x218] sm:$0xff]
    %v134 = vld [vmem:[#allocation5 + $0x220] sm:$0xff]
    %v135 = vld [vmem:[#allocation5 + $0x228] sm:$0xff]
    %v136 = vld [vmem:[#allocation5 + $0x230] sm:$0xff]
    %v137 = vld [vmem:[#allocation5 + $0x238] sm:$0xff]
    %v138 = vld [vmem:[#allocation5 + $0x240] sm:$0xff]
    %v139 = vld [vmem:[#allocation5 + $0x248] sm:$0xff]
    %v140 = vld [vmem:[#allocation5 + $0x250] sm:$0xff]
    %v141 = vld [vmem:[#allocation5 + $0x258] sm:$0xff]
    %v142 = vld [vmem:[#allocation5 + $0x260] sm:$0xff]
    %v143 = vld [vmem:[#allocation5 + $0x268] sm:$0xff]
    %v144 = vld [vmem:[#allocation5 + $0x270] sm:$0xff]
    %v145 = vld [vmem:[#allocation5 + $0x278] sm:$0xff]
    %v146 = vld [vmem:[#allocation5 + $0x280] sm:$0xff]
    %v147 = vld [vmem:[#allocation5 + $0x288] sm:$0xff]
    %v148 = vld [vmem:[#allocation5 + $0x290] sm:$0xff]
    %v149 = vld [vmem:[#allocation5 + $0x298] sm:$0xff]
    %v150 = vld [vmem:[#allocation5 + $0x2a0] sm:$0xff]
    %v151 = vld [vmem:[#allocation5 + $0x2a8] sm:$0xff]
    %v152 = vld [vmem:[#allocation5 + $0x2b0] sm:$0xff]
    %v153 = vld [vmem:[#allocation5 + $0x2b8] sm:$0xff]
    %v154 = vld [vmem:[#allocation5 + $0x2c0] sm:$0xff]
    %v155 = vld [vmem:[#allocation5 + $0x2c8] sm:$0xff]
    %v156 = vld [vmem:[#allocation5 + $0x2d0] sm:$0xff]
    %v157 = vld [vmem:[#allocation5 + $0x2d8] sm:$0xff]
    %v158 = vld [vmem:[#allocation5 + $0x2e0] sm:$0xff]
    %v159 = vld [vmem:[#allocation5 + $0x2e8] sm:$0xff]
    %v160 = vld [vmem:[#allocation5 + $0x2f0] sm:$0xff]
    %v161 = vld [vmem:[#allocation5 + $0x2f8] sm:$0xff]
    %v162 = vld [vmem:[#allocation5 + $0x300] sm:$0xff]
    %v163 = vld [vmem:[#allocation5 + $0x308] sm:$0xff]
    %v164 = vld [vmem:[#allocation5 + $0x310] sm:$0xff]
    %v165 = vld [vmem:[#allocation5 + $0x318] sm:$0xff]
    %v166 = vld [vmem:[#allocation5 + $0x320] sm:$0xff]
    %v167 = vld [vmem:[#allocation5 + $0x328] sm:$0xff]
    %v168 = vld [vmem:[#allocation5 + $0x330] sm:$0xff]
    %v169 = vld [vmem:[#allocation5 + $0x338] sm:$0xff]
    %v170 = vld [vmem:[#allocation5 + $0x340] sm:$0xff]
    %v171 = vld [vmem:[#allocation5 + $0x348] sm:$0xff]
    %v172 = vld [vmem:[#allocation5 + $0x350] sm:$0xff]
    %v173 = vld [vmem:[#allocation5 + $0x358] sm:$0xff]
    %v174 = vld [vmem:[#allocation5 + $0x360] sm:$0xff]
    %v175 = vld [vmem:[#allocation5 + $0x368] sm:$0xff]
    %v176 = vld [vmem:[#allocation5 + $0x370] sm:$0xff]
    %v177 = vld [vmem:[#allocation5 + $0x378] sm:$0xff]
    %v178 = vld [vmem:[#allocation5 + $0x380] sm:$0xff]
    %v179 = vld [vmem:[#allocation5 + $0x388] sm:$0xff]
    %v180 = vld [vmem:[#allocation5 + $0x390] sm:$0xff]
    %v181 = vld [vmem:[#allocation5 + $0x398] sm:$0xff]
    %v182 = vld [vmem:[#allocation5 + $0x3a0] sm:$0xff]
    %v183 = vld [vmem:[#allocation5 + $0x3a8] sm:$0xff]
    %v184 = vld [vmem:[#allocation5 + $0x3b0] sm:$0xff]
    %v185 = vld [vmem:[#allocation5 + $0x3b8] sm:$0xff]
    %v186 = vld [vmem:[#allocation5 + $0x3c0] sm:$0xff]
    %v187 = vld [vmem:[#allocation5 + $0x3c8] sm:$0xff]
    %v188 = vld [vmem:[#allocation5 + $0x3d0] sm:$0xff]
    %v189 = vld [vmem:[#allocation5 + $0x3d8] sm:$0xff]
    %v190 = vld [vmem:[#allocation5 + $0x3e0] sm:$0xff]
    %v191 = vld [vmem:[#allocation5 + $0x3e8] sm:$0xff]
    %v192 = vld [vmem:[#allocation5 + $0x3f0] sm:$0xff]
    %v193 = vld [vmem:[#allocation5 + $0x3f8] sm:$0xff]
    %v194 = vld [vmem:[%s2] sm:$0xf]
    %v196 = vlaneseq
    %v197 = vshrl.u32 %v196, 7
    %v198 = vsub.s32 0, %v197
    %v199 = vrot.slane %v194, %v198
    %v200 = vlaneseq
    %v201 = vshrl.u32 %v200, 7
    %v202 = vsub.s32 1, %v201
    %v203 = vrot.slane %v194, %v202
    %v204 = vlaneseq
    %v205 = vshrl.u32 %v204, 7
    %v206 = vsub.s32 2, %v205
    %v207 = vrot.slane %v194, %v206
    %v208 = vlaneseq
    %v209 = vshrl.u32 %v208, 7
    %v210 = vsub.s32 3, %v209
    %v211 = vrot.slane %v194, %v210
    %216 = vmatprep.subr.mxu0 %v127
    %217 = vmatpush1.msra.mxu0 %v126
    %218 = vmatprep.subr.mxu0 %v123
    %219 = vmatpush1.msra.mxu0 %v122
    %220 = vmatprep.subr.mxu0 %v119
    %221 = vmatpush1.msra.mxu0 %v118
    %222 = vmatprep.subr.mxu0 %v115
    %223 = vmatpush1.msra.mxu0 %v114
    %224 = vmatprep.subr.mxu0 %v111
    %225 = vmatpush1.msra.mxu0 %v110
    %226 = vmatprep.subr.mxu0 %v107
    %227 = vmatpush1.msra.mxu0 %v106
    %228 = vmatprep.subr.mxu0 %v103
    %229 = vmatpush1.msra.mxu0 %v102
    %230 = vmatprep.subr.mxu0 %v99
    %231 = vmatpush1.msra.mxu0 %v98
    %232 = vmatprep.subr.mxu0 %v95
    %233 = vmatpush1.msra.mxu0 %v94
    %234 = vmatprep.subr.mxu0 %v91
    %235 = vmatpush1.msra.mxu0 %v90
    %236 = vmatprep.subr.mxu0 %v87
    %237 = vmatpush1.msra.mxu0 %v86
    %238 = vmatprep.subr.mxu0 %v83
    %239 = vmatpush1.msra.mxu0 %v82
    %240 = vmatprep.subr.mxu0 %v79
    %241 = vmatpush1.msra.mxu0 %v78
    %242 = vmatprep.subr.mxu0 %v75
    %243 = vmatpush1.msra.mxu0 %v74
    %244 = vmatprep.subr.mxu0 %v71
    %245 = vmatpush1.msra.mxu0 %v70
    %246 = vmatprep.subr.mxu0 %v67
    %247 = vmatpush1.msra.mxu0 %v66
    %248 = vmatprep.subr.mxu0 %v191
    %249 = vmatpush2.msra.mxu0 %v190
    %250 = vmatprep.subr.mxu0 %v187
    %251 = vmatpush2.msra.mxu0 %v186
    %252 = vmatprep.subr.mxu0 %v183
    %253 = vmatpush2.msra.mxu0 %v182
    %254 = vmatprep.subr.mxu0 %v179
    %255 = vmatpush2.msra.mxu0 %v178
    %256 = vmatprep.subr.mxu0 %v175
    %257 = vmatpush2.msra.mxu0 %v174
    %258 = vmatprep.subr.mxu0 %v171
    %259 = vmatpush2.msra.mxu0 %v170
    %260 = vmatprep.subr.mxu0 %v167
    %261 = vmatpush2.msra.mxu0 %v166
    %262 = vmatprep.subr.mxu0 %v163
    %263 = vmatpush2.msra.mxu0 %v162
    %264 = vmatprep.subr.mxu0 %v159
    %265 = vmatpush2.msra.mxu0 %v158
    %266 = vmatprep.subr.mxu0 %v155
    %267 = vmatpush2.msra.mxu0 %v154
    %268 = vmatprep.subr.mxu0 %v151
    %269 = vmatpush2.msra.mxu0 %v150
    %270 = vmatprep.subr.mxu0 %v147
    %271 = vmatpush2.msra.mxu0 %v146
    %272 = vmatprep.subr.mxu0 %v143
    %273 = vmatpush2.msra.mxu0 %v142
    %274 = vmatprep.subr.mxu0 %v139
    %275 = vmatpush2.msra.mxu0 %v138
    %276 = vmatprep.subr.mxu0 %v135
    %277 = vmatpush2.msra.mxu0 %v134
    %278 = vmatprep.subr.mxu0 %v131
    %279 = vmatpush2.msra.mxu0 %v130
    %280 = vmatprep.mubr.f32.mxu0 %v63
    %281 = vmatmul.mubr.f32.gmra.mxu0 %v62
    %v282 = vpop.f32.mrf.mxu0
    %v283 = vadd.f32 %v199, %v282
    %v284 = vpop.f32.mrf.mxu0
    %v285 = vadd.f32 %v203, %v284
    %286 = vmatprep.mubr.f32.mxu0 %v65
    %287 = vmatmul.mubr.f32.gmra.mxu0 %v64
    %v288 = vpop.f32.mrf.mxu0
    %v289 = vadd.f32 %v199, %v288
    %v290 = vpop.f32.mrf.mxu0
    %v291 = vadd.f32 %v203, %v290
    %292 = vdwg.mxu0
    %293 = vmatprep.subr.mxu0 %v129
    %294 = vmatpush1.msra.mxu0 %v128
    %295 = vmatprep.subr.mxu0 %v125
    %296 = vmatpush1.msra.mxu0 %v124
    %297 = vmatprep.subr.mxu0 %v121
    %298 = vmatpush1.msra.mxu0 %v120
    %299 = vmatprep.subr.mxu0 %v117
    %300 = vmatpush1.msra.mxu0 %v116
    %301 = vmatprep.subr.mxu0 %v113
    %302 = vmatpush1.msra.mxu0 %v112
    %303 = vmatprep.subr.mxu0 %v109
    %304 = vmatpush1.msra.mxu0 %v108
    %305 = vmatprep.subr.mxu0 %v105
    %306 = vmatpush1.msra.mxu0 %v104
    %307 = vmatprep.subr.mxu0 %v101
    %308 = vmatpush1.msra.mxu0 %v100
    %309 = vmatprep.subr.mxu0 %v97
    %310 = vmatpush1.msra.mxu0 %v96
    %311 = vmatprep.subr.mxu0 %v93
    %312 = vmatpush1.msra.mxu0 %v92
    %313 = vmatprep.subr.mxu0 %v89
    %314 = vmatpush1.msra.mxu0 %v88
    %315 = vmatprep.subr.mxu0 %v85
    %316 = vmatpush1.msra.mxu0 %v84
    %317 = vmatprep.subr.mxu0 %v81
    %318 = vmatpush1.msra.mxu0 %v80
    %319 = vmatprep.subr.mxu0 %v77
    %320 = vmatpush1.msra.mxu0 %v76
    %321 = vmatprep.subr.mxu0 %v73
    %322 = vmatpush1.msra.mxu0 %v72
    %323 = vmatprep.subr.mxu0 %v69
    %324 = vmatpush1.msra.mxu0 %v68
    %325 = vmatprep.subr.mxu0 %v193
    %326 = vmatpush2.msra.mxu0 %v192
    %327 = vmatprep.subr.mxu0 %v189
    %328 = vmatpush2.msra.mxu0 %v188
    %329 = vmatprep.subr.mxu0 %v185
    %330 = vmatpush2.msra.mxu0 %v184
    %331 = vmatprep.subr.mxu0 %v181
    %332 = vmatpush2.msra.mxu0 %v180
    %333 = vmatprep.subr.mxu0 %v177
    %334 = vmatpush2.msra.mxu0 %v176
    %335 = vmatprep.subr.mxu0 %v173
    %336 = vmatpush2.msra.mxu0 %v172
    %337 = vmatprep.subr.mxu0 %v169
    %338 = vmatpush2.msra.mxu0 %v168
    %339 = vmatprep.subr.mxu0 %v165
    %340 = vmatpush2.msra.mxu0 %v164
    %341 = vmatprep.subr.mxu0 %v161
    %342 = vmatpush2.msra.mxu0 %v160
    %343 = vmatprep.subr.mxu0 %v157
    %344 = vmatpush2.msra.mxu0 %v156
    %345 = vmatprep.subr.mxu0 %v153
    %346 = vmatpush2.msra.mxu0 %v152
    %347 = vmatprep.subr.mxu0 %v149
    %348 = vmatpush2.msra.mxu0 %v148
    %349 = vmatprep.subr.mxu0 %v145
    %350 = vmatpush2.msra.mxu0 %v144
    %351 = vmatprep.subr.mxu0 %v141
    %352 = vmatpush2.msra.mxu0 %v140
    %353 = vmatprep.subr.mxu0 %v137
    %354 = vmatpush2.msra.mxu0 %v136
    %355 = vmatprep.subr.mxu0 %v133
    %356 = vmatpush2.msra.mxu0 %v132
    %357 = vmatprep.mubr.f32.mxu0 %v63
    %358 = vmatmul.mubr.f32.gmra.mxu0 %v62
    %v359 = vpop.f32.mrf.mxu0
    %v360 = vadd.f32 %v207, %v359
    %v361 = vpop.f32.mrf.mxu0
    %v362 = vadd.f32 %v211, %v361
    %363 = vmatprep.mubr.f32.mxu0 %v65
    %364 = vmatmul.mubr.f32.gmra.mxu0 %v64
    %v365 = vpop.f32.mrf.mxu0
    %v366 = vadd.f32 %v207, %v365
    %v367 = vpop.f32.mrf.mxu0
    %v368 = vadd.f32 %v211, %v367
    %369 = vdwg.mxu0
    %v370 = vmul.f32 %v283, 0.5
    %v371 = vmul.f32 %v285, 0.5
    %v372 = vmul.f32 %v360, 0.5
    %v373 = vmul.f32 %v362, 0.5
    %v374 = vmul.f32 %v289, 0.5
    %v375 = vmul.f32 %v291, 0.5
    %v376 = vmul.f32 %v366, 0.5
    %v377 = vmul.f32 %v368, 0.5
    %v378 = vmul.f32 %v283, 0.70710677
    %v379 = vmul.f32 %v285, 0.70710677
    %v380 = vmul.f32 %v360, 0.70710677
    %v381 = vmul.f32 %v362, 0.70710677
    %v382 = vmul.f32 %v289, 0.70710677
    %v383 = vmul.f32 %v291, 0.70710677
    %v384 = vmul.f32 %v366, 0.70710677
    %v385 = vmul.f32 %v368, 0.70710677
    %v386 = verf.f32.pop %v378
    %v387 = verf.f32.pop %v379
    %v388 = verf.f32.pop %v380
    %v389 = verf.f32.pop %v381
    %v390 = verf.f32.pop %v382
    %v391 = verf.f32.pop %v383
    %v392 = verf.f32.pop %v384
    %v393 = verf.f32.pop %v385
    %v394 = vadd.f32 %v386, 1.0
    %v395 = vadd.f32 %v387, 1.0
    %v396 = vadd.f32 %v388, 1.0
    %v397 = vadd.f32 %v389, 1.0
    %v398 = vadd.f32 %v390, 1.0
    %v399 = vadd.f32 %v391, 1.0
    %v400 = vadd.f32 %v392, 1.0
    %v401 = vadd.f32 %v393, 1.0
    %v402 = vmul.f32 %v370, %v394
    %v403 = vmul.f32 %v371, %v395
    %v404 = vmul.f32 %v372, %v396
    %v405 = vmul.f32 %v373, %v397
    %v406 = vmul.f32 %v374, %v398
    %v407 = vmul.f32 %v375, %v399
    %v408 = vmul.f32 %v376, %v400
    %v409 = vmul.f32 %v377, %v401
    %v410 = vld [vmem:[#allocation7] sm:$0xff]
    %v411 = vld [vmem:[#allocation7 + $0x8] sm:$0xff]
    %v412 = vld [vmem:[#allocation7 + $0x10] sm:$0xff]
    %v413 = vld [vmem:[#allocation7 + $0x18] sm:$0xff]
    %v414 = vld [vmem:[#allocation7 + $0x20] sm:$0xff]
    %v415 = vld [vmem:[#allocation7 + $0x28] sm:$0xff]
    %v416 = vld [vmem:[#allocation7 + $0x30] sm:$0xff]
    %v417 = vld [vmem:[#allocation7 + $0x38] sm:$0xff]
    %v418 = vld [vmem:[#allocation7 + $0x40] sm:$0xff]
    %v419 = vld [vmem:[#allocation7 + $0x48] sm:$0xff]
    %v420 = vld [vmem:[#allocation7 + $0x50] sm:$0xff]
    %v421 = vld [vmem:[#allocation7 + $0x58] sm:$0xff]
    %v422 = vld [vmem:[#allocation7 + $0x60] sm:$0xff]
    %v423 = vld [vmem:[#allocation7 + $0x68] sm:$0xff]
    %v424 = vld [vmem:[#allocation7 + $0x70] sm:$0xff]
    %v425 = vld [vmem:[#allocation7 + $0x78] sm:$0xff]
    %v426 = vld [vmem:[#allocation7 + $0x80] sm:$0xff]
    %v427 = vld [vmem:[#allocation7 + $0x88] sm:$0xff]
    %v428 = vld [vmem:[#allocation7 + $0x90] sm:$0xff]
    %v429 = vld [vmem:[#allocation7 + $0x98] sm:$0xff]
    %v430 = vld [vmem:[#allocation7 + $0xa0] sm:$0xff]
    %v431 = vld [vmem:[#allocation7 + $0xa8] sm:$0xff]
    %v432 = vld [vmem:[#allocation7 + $0xb0] sm:$0xff]
    %v433 = vld [vmem:[#allocation7 + $0xb8] sm:$0xff]
    %v434 = vld [vmem:[#allocation7 + $0xc0] sm:$0xff]
    %v435 = vld [vmem:[#allocation7 + $0xc8] sm:$0xff]
    %v436 = vld [vmem:[#allocation7 + $0xd0] sm:$0xff]
    %v437 = vld [vmem:[#allocation7 + $0xd8] sm:$0xff]
    %v438 = vld [vmem:[#allocation7 + $0xe0] sm:$0xff]
    %v439 = vld [vmem:[#allocation7 + $0xe8] sm:$0xff]
    %v440 = vld [vmem:[#allocation7 + $0xf0] sm:$0xff]
    %v441 = vld [vmem:[#allocation7 + $0xf8] sm:$0xff]
    %v442 = vld [vmem:[#allocation7 + $0x100] sm:$0xff]
    %v443 = vld [vmem:[#allocation7 + $0x108] sm:$0xff]
    %v444 = vld [vmem:[#allocation7 + $0x110] sm:$0xff]
    %v445 = vld [vmem:[#allocation7 + $0x118] sm:$0xff]
    %v446 = vld [vmem:[#allocation7 + $0x120] sm:$0xff]
    %v447 = vld [vmem:[#allocation7 + $0x128] sm:$0xff]
    %v448 = vld [vmem:[#allocation7 + $0x130] sm:$0xff]
    %v449 = vld [vmem:[#allocation7 + $0x138] sm:$0xff]
    %v450 = vld [vmem:[#allocation7 + $0x140] sm:$0xff]
    %v451 = vld [vmem:[#allocation7 + $0x148] sm:$0xff]
    %v452 = vld [vmem:[#allocation7 + $0x150] sm:$0xff]
    %v453 = vld [vmem:[#allocation7 + $0x158] sm:$0xff]
    %v454 = vld [vmem:[#allocation7 + $0x160] sm:$0xff]
    %v455 = vld [vmem:[#allocation7 + $0x168] sm:$0xff]
    %v456 = vld [vmem:[#allocation7 + $0x170] sm:$0xff]
    %v457 = vld [vmem:[#allocation7 + $0x178] sm:$0xff]
    %v458 = vld [vmem:[#allocation7 + $0x180] sm:$0xff]
    %v459 = vld [vmem:[#allocation7 + $0x188] sm:$0xff]
    %v460 = vld [vmem:[#allocation7 + $0x190] sm:$0xff]
    %v461 = vld [vmem:[#allocation7 + $0x198] sm:$0xff]
    %v462 = vld [vmem:[#allocation7 + $0x1a0] sm:$0xff]
    %v463 = vld [vmem:[#allocation7 + $0x1a8] sm:$0xff]
    %v464 = vld [vmem:[#allocation7 + $0x1b0] sm:$0xff]
    %v465 = vld [vmem:[#allocation7 + $0x1b8] sm:$0xff]
    %v466 = vld [vmem:[#allocation7 + $0x1c0] sm:$0xff]
    %v467 = vld [vmem:[#allocation7 + $0x1c8] sm:$0xff]
    %v468 = vld [vmem:[#allocation7 + $0x1d0] sm:$0xff]
    %v469 = vld [vmem:[#allocation7 + $0x1d8] sm:$0xff]
    %v470 = vld [vmem:[#allocation7 + $0x1e0] sm:$0xff]
    %v471 = vld [vmem:[#allocation7 + $0x1e8] sm:$0xff]
    %v472 = vld [vmem:[#allocation7 + $0x1f0] sm:$0xff]
    %v473 = vld [vmem:[#allocation7 + $0x1f8] sm:$0xff]
    %v474 = vld [vmem:[#allocation7 + $0x200] sm:$0xff]
    %v475 = vld [vmem:[#allocation7 + $0x208] sm:$0xff]
    %v476 = vld [vmem:[#allocation7 + $0x210] sm:$0xff]
    %v477 = vld [vmem:[#allocation7 + $0x218] sm:$0xff]
    %v478 = vld [vmem:[#allocation7 + $0x220] sm:$0xff]
    %v479 = vld [vmem:[#allocation7 + $0x228] sm:$0xff]
    %v480 = vld [vmem:[#allocation7 + $0x230] sm:$0xff]
    %v481 = vld [vmem:[#allocation7 + $0x238] sm:$0xff]
    %v482 = vld [vmem:[#allocation7 + $0x240] sm:$0xff]
    %v483 = vld [vmem:[#allocation7 + $0x248] sm:$0xff]
    %v484 = vld [vmem:[#allocation7 + $0x250] sm:$0xff]
    %v485 = vld [vmem:[#allocation7 + $0x258] sm:$0xff]
    %v486 = vld [vmem:[#allocation7 + $0x260] sm:$0xff]
    %v487 = vld [vmem:[#allocation7 + $0x268] sm:$0xff]
    %v488 = vld [vmem:[#allocation7 + $0x270] sm:$0xff]
    %v489 = vld [vmem:[#allocation7 + $0x278] sm:$0xff]
    %v490 = vld [vmem:[#allocation7 + $0x280] sm:$0xff]
    %v491 = vld [vmem:[#allocation7 + $0x288] sm:$0xff]
    %v492 = vld [vmem:[#allocation7 + $0x290] sm:$0xff]
    %v493 = vld [vmem:[#allocation7 + $0x298] sm:$0xff]
    %v494 = vld [vmem:[#allocation7 + $0x2a0] sm:$0xff]
    %v495 = vld [vmem:[#allocation7 + $0x2a8] sm:$0xff]
    %v496 = vld [vmem:[#allocation7 + $0x2b0] sm:$0xff]
    %v497 = vld [vmem:[#allocation7 + $0x2b8] sm:$0xff]
    %v498 = vld [vmem:[#allocation7 + $0x2c0] sm:$0xff]
    %v499 = vld [vmem:[#allocation7 + $0x2c8] sm:$0xff]
    %v500 = vld [vmem:[#allocation7 + $0x2d0] sm:$0xff]
    %v501 = vld [vmem:[#allocation7 + $0x2d8] sm:$0xff]
    %v502 = vld [vmem:[#allocation7 + $0x2e0] sm:$0xff]
    %v503 = vld [vmem:[#allocation7 + $0x2e8] sm:$0xff]
    %v504 = vld [vmem:[#allocation7 + $0x2f0] sm:$0xff]
    %v505 = vld [vmem:[#allocation7 + $0x2f8] sm:$0xff]
    %v506 = vld [vmem:[#allocation7 + $0x300] sm:$0xff]
    %v507 = vld [vmem:[#allocation7 + $0x308] sm:$0xff]
    %v508 = vld [vmem:[#allocation7 + $0x310] sm:$0xff]
    %v509 = vld [vmem:[#allocation7 + $0x318] sm:$0xff]
    %v510 = vld [vmem:[#allocation7 + $0x320] sm:$0xff]
    %v511 = vld [vmem:[#allocation7 + $0x328] sm:$0xff]
    %v512 = vld [vmem:[#allocation7 + $0x330] sm:$0xff]
    %v513 = vld [vmem:[#allocation7 + $0x338] sm:$0xff]
    %v514 = vld [vmem:[#allocation7 + $0x340] sm:$0xff]
    %v515 = vld [vmem:[#allocation7 + $0x348] sm:$0xff]
    %v516 = vld [vmem:[#allocation7 + $0x350] sm:$0xff]
    %v517 = vld [vmem:[#allocation7 + $0x358] sm:$0xff]
    %v518 = vld [vmem:[#allocation7 + $0x360] sm:$0xff]
    %v519 = vld [vmem:[#allocation7 + $0x368] sm:$0xff]
    %v520 = vld [vmem:[#allocation7 + $0x370] sm:$0xff]
    %v521 = vld [vmem:[#allocation7 + $0x378] sm:$0xff]
    %v522 = vld [vmem:[#allocation7 + $0x380] sm:$0xff]
    %v523 = vld [vmem:[#allocation7 + $0x388] sm:$0xff]
    %v524 = vld [vmem:[#allocation7 + $0x390] sm:$0xff]
    %v525 = vld [vmem:[#allocation7 + $0x398] sm:$0xff]
    %v526 = vld [vmem:[#allocation7 + $0x3a0] sm:$0xff]
    %v527 = vld [vmem:[#allocation7 + $0x3a8] sm:$0xff]
    %v528 = vld [vmem:[#allocation7 + $0x3b0] sm:$0xff]
    %v529 = vld [vmem:[#allocation7 + $0x3b8] sm:$0xff]
    %v530 = vld [vmem:[#allocation7 + $0x3c0] sm:$0xff]
    %v531 = vld [vmem:[#allocation7 + $0x3c8] sm:$0xff]
    %v532 = vld [vmem:[#allocation7 + $0x3d0] sm:$0xff]
    %v533 = vld [vmem:[#allocation7 + $0x3d8] sm:$0xff]
    %v534 = vld [vmem:[#allocation7 + $0x3e0] sm:$0xff]
    %v535 = vld [vmem:[#allocation7 + $0x3e8] sm:$0xff]
    %v536 = vld [vmem:[#allocation7 + $0x3f0] sm:$0xff]
    %v537 = vld [vmem:[#allocation7 + $0x3f8] sm:$0xff]
    %v538 = vld [vmem:[%s4] sm:$0x3]
    %v540 = vlaneseq
    %v541 = vshrl.u32 %v540, 7
    %v542 = vsub.s32 0, %v541
    %v543 = vrot.slane %v538, %v542
    %v544 = vlaneseq
    %v545 = vshrl.u32 %v544, 7
    %v546 = vsub.s32 1, %v545
    %v547 = vrot.slane %v538, %v546
    %550 = vmatprep.subr.mxu0 %v441
    %551 = vmatpush1.msra.mxu0 %v440
    %552 = vmatprep.subr.mxu0 %v439
    %553 = vmatpush1.msra.mxu0 %v438
    %554 = vmatprep.subr.mxu0 %v437
    %555 = vmatpush1.msra.mxu0 %v436
    %556 = vmatprep.subr.mxu0 %v435
    %557 = vmatpush1.msra.mxu0 %v434
    %558 = vmatprep.subr.mxu0 %v433
    %559 = vmatpush1.msra.mxu0 %v432
    %560 = vmatprep.subr.mxu0 %v431
    %561 = vmatpush1.msra.mxu0 %v430
    %562 = vmatprep.subr.mxu0 %v429
    %563 = vmatpush1.msra.mxu0 %v428
    %564 = vmatprep.subr.mxu0 %v427
    %565 = vmatpush1.msra.mxu0 %v426
    %566 = vmatprep.subr.mxu0 %v425
    %567 = vmatpush1.msra.mxu0 %v424
    %568 = vmatprep.subr.mxu0 %v423
    %569 = vmatpush1.msra.mxu0 %v422
    %570 = vmatprep.subr.mxu0 %v421
    %571 = vmatpush1.msra.mxu0 %v420
    %572 = vmatprep.subr.mxu0 %v419
    %573 = vmatpush1.msra.mxu0 %v418
    %574 = vmatprep.subr.mxu0 %v417
    %575 = vmatpush1.msra.mxu0 %v416
    %576 = vmatprep.subr.mxu0 %v415
    %577 = vmatpush1.msra.mxu0 %v414
    %578 = vmatprep.subr.mxu0 %v413
    %579 = vmatpush1.msra.mxu0 %v412
    %580 = vmatprep.subr.mxu0 %v411
    %581 = vmatpush1.msra.mxu0 %v410
    %582 = vmatprep.subr.mxu0 %v473
    %583 = vmatpush2.msra.mxu0 %v472
    %584 = vmatprep.subr.mxu0 %v471
    %585 = vmatpush2.msra.mxu0 %v470
    %586 = vmatprep.subr.mxu0 %v469
    %587 = vmatpush2.msra.mxu0 %v468
    %588 = vmatprep.subr.mxu0 %v467
    %589 = vmatpush2.msra.mxu0 %v466
    %590 = vmatprep.subr.mxu0 %v465
    %591 = vmatpush2.msra.mxu0 %v464
    %592 = vmatprep.subr.mxu0 %v463
    %593 = vmatpush2.msra.mxu0 %v462
    %594 = vmatprep.subr.mxu0 %v461
    %595 = vmatpush2.msra.mxu0 %v460
    %596 = vmatprep.subr.mxu0 %v459
    %597 = vmatpush2.msra.mxu0 %v458
    %598 = vmatprep.subr.mxu0 %v457
    %599 = vmatpush2.msra.mxu0 %v456
    %600 = vmatprep.subr.mxu0 %v455
    %601 = vmatpush2.msra.mxu0 %v454
    %602 = vmatprep.subr.mxu0 %v453
    %603 = vmatpush2.msra.mxu0 %v452
    %604 = vmatprep.subr.mxu0 %v451
    %605 = vmatpush2.msra.mxu0 %v450
    %606 = vmatprep.subr.mxu0 %v449
    %607 = vmatpush2.msra.mxu0 %v448
    %608 = vmatprep.subr.mxu0 %v447
    %609 = vmatpush2.msra.mxu0 %v446
    %610 = vmatprep.subr.mxu0 %v445
    %611 = vmatpush2.msra.mxu0 %v444
    %612 = vmatprep.subr.mxu0 %v443
    %613 = vmatpush2.msra.mxu0 %v442
    %614 = vmatprep.mubr.f32.mxu0 %v403
    %615 = vmatmul.mubr.f32.gmra.mxu0 %v402
    %v616 = vpop.f32.mrf.mxu0
    %v617 = vadd.f32 %v543, %v616
    %v618 = vpop.f32.mrf.mxu0
    %v619 = vadd.f32 %v547, %v618
    %620 = vmatprep.mubr.f32.mxu0 %v407
    %621 = vmatmul.mubr.f32.gmra.mxu0 %v406
    %v622 = vpop.f32.mrf.mxu0
    %v623 = vadd.f32 %v543, %v622
    %v624 = vpop.f32.mrf.mxu0
    %v625 = vadd.f32 %v547, %v624
    %626 = vdwg.mxu0
    %627 = vmatprep.subr.mxu0 %v505
    %628 = vmatpush1.msra.mxu0 %v504
    %629 = vmatprep.subr.mxu0 %v503
    %630 = vmatpush1.msra.mxu0 %v502
    %631 = vmatprep.subr.mxu0 %v501
    %632 = vmatpush1.msra.mxu0 %v500
    %633 = vmatprep.subr.mxu0 %v499
    %634 = vmatpush1.msra.mxu0 %v498
    %635 = vmatprep.subr.mxu0 %v497
    %636 = vmatpush1.msra.mxu0 %v496
    %637 = vmatprep.subr.mxu0 %v495
    %638 = vmatpush1.msra.mxu0 %v494
    %639 = vmatprep.subr.mxu0 %v493
    %640 = vmatpush1.msra.mxu0 %v492
    %641 = vmatprep.subr.mxu0 %v491
    %642 = vmatpush1.msra.mxu0 %v490
    %643 = vmatprep.subr.mxu0 %v489
    %644 = vmatpush1.msra.mxu0 %v488
    %645 = vmatprep.subr.mxu0 %v487
    %646 = vmatpush1.msra.mxu0 %v486
    %647 = vmatprep.subr.mxu0 %v485
    %648 = vmatpush1.msra.mxu0 %v484
    %649 = vmatprep.subr.mxu0 %v483
    %650 = vmatpush1.msra.mxu0 %v482
    %651 = vmatprep.subr.mxu0 %v481
    %652 = vmatpush1.msra.mxu0 %v480
    %653 = vmatprep.subr.mxu0 %v479
    %654 = vmatpush1.msra.mxu0 %v478
    %655 = vmatprep.subr.mxu0 %v477
    %656 = vmatpush1.msra.mxu0 %v476
    %657 = vmatprep.subr.mxu0 %v475
    %658 = vmatpush1.msra.mxu0 %v474
    %659 = vmatprep.subr.mxu0 %v537
    %660 = vmatpush2.msra.mxu0 %v536
    %661 = vmatprep.subr.mxu0 %v535
    %662 = vmatpush2.msra.mxu0 %v534
    %663 = vmatprep.subr.mxu0 %v533
    %664 = vmatpush2.msra.mxu0 %v532
    %665 = vmatprep.subr.mxu0 %v531
    %666 = vmatpush2.msra.mxu0 %v530
    %667 = vmatprep.subr.mxu0 %v529
    %668 = vmatpush2.msra.mxu0 %v528
    %669 = vmatprep.subr.mxu0 %v527
    %670 = vmatpush2.msra.mxu0 %v526
    %671 = vmatprep.subr.mxu0 %v525
    %672 = vmatpush2.msra.mxu0 %v524
    %673 = vmatprep.subr.mxu0 %v523
    %674 = vmatpush2.msra.mxu0 %v522
    %675 = vmatprep.subr.mxu0 %v521
    %676 = vmatpush2.msra.mxu0 %v520
    %677 = vmatprep.subr.mxu0 %v519
    %678 = vmatpush2.msra.mxu0 %v518
    %679 = vmatprep.subr.mxu0 %v517
    %680 = vmatpush2.msra.mxu0 %v516
    %681 = vmatprep.subr.mxu0 %v515
    %682 = vmatpush2.msra.mxu0 %v514
    %683 = vmatprep.subr.mxu0 %v513
    %684 = vmatpush2.msra.mxu0 %v512
    %685 = vmatprep.subr.mxu0 %v511
    %686 = vmatpush2.msra.mxu0 %v510
    %687 = vmatprep.subr.mxu0 %v509
    %688 = vmatpush2.msra.mxu0 %v508
    %689 = vmatprep.subr.mxu0 %v507
    %690 = vmatpush2.msra.mxu0 %v506
    %691 = vmatprep.mubr.f32.mxu0 %v405
    %692 = vmatmul.mubr.f32.gmra.mxu0 %v404
    %v693 = vpop.f32.mrf.mxu0
    %v694 = vadd.f32 %v617, %v693
    %v695 = vpop.f32.mrf.mxu0
    %v696 = vadd.f32 %v619, %v695
    %697 = vmatprep.mubr.f32.mxu0 %v409
    %698 = vmatmul.mubr.f32.gmra.mxu0 %v408
    %v699 = vpop.f32.mrf.mxu0
    %v700 = vadd.f32 %v623, %v699
    %v701 = vpop.f32.mrf.mxu0
    %v702 = vadd.f32 %v625, %v701
    %703 = vdwg.mxu0
    %704 = vst [vmem:[#allocation8] sm:$0xff] %v694
    %705 = vst [vmem:[#allocation8 + $0x8] sm:$0xff] %v696
    %706 = vst [vmem:[#allocation8 + $0x10] sm:$0xff] %v700
    %707 = vst [vmem:[#allocation8 + $0x18] sm:$0xff] %v702
    // Predicated region
    $region34: #{_mlp_pallas.1} parent=1 // pred_check
      _
    $region35: #{_mlp_pallas.1} parent=1 // pred_check_branch
      %709 = sbr.rel (0) target = $region37
    $region36: #{_mlp_pallas.1} parent=1 // pred_region
      %s711 = ssub.s32 512, 512
      %712 = vsyncadd [#allocation4], %s711
      %s713 = sshll.u32 [#allocation8], 4
      %s714 = int_to_ptr.vmem [resolvable:$true] %s713
      %719 = dma.vmem_to_hbm [thread:$0]  %s714, 512, %s5, [#allocation4], 256, 256, 16
    $region37: #{_mlp_pallas.1} parent=1 // pred_fallthru
      _
    // Predicated region
    $region38: #{_mlp_pallas.1} parent=1 // pred_check
      _
    $region39: #{_mlp_pallas.1} parent=1 // pred_check_branch
      %721 = sbr.rel (0) target = $region41
    $region40: #{_mlp_pallas.1} parent=1 // pred_region
      %722 = dma.done [#allocation4], 512
    $region41: #{_mlp_pallas.1} parent=1 // pred_fallthru
      _
    %723 = vsyncpa [#allocation3], 1
    %724 = vsyncpa [#allocation6], 1
    %725 = vsyncpa [#allocation4], 1

// kernel: _mlp_pallas.1
$region0: #{_mlp_pallas.1}
  #allocation0 [shape = 'u32[]', space=smem, size = 0x4, offset = 0x4, fixed_abs, tag = 'smem constant byte address 0x4 - core index']
  #allocation1 [shape = 'u32[144,128]{1,0:T(1,128)}', space=vmem, size = 0x12000, scoped, tag = 'internal scratch']
  %s0 = inlined_call_operand.hbm [shape: f32[16,256], index: 0, kind: input, shape index: {}]
  %s1 = inlined_call_operand.hbm [shape: f32[256,512], index: 1, kind: input, shape index: {}]
  %s2 = inlined_call_operand.vmem [shape: f32[1,512], index: 2, kind: input, shape index: {}]
  %s3 = inlined_call_operand.hbm [shape: f32[512,256], index: 3, kind: input, shape index: {}]
  %s4 = inlined_call_operand.vmem [shape: f32[1,256], index: 4, kind: input, shape index: {}]
  %s5 = inlined_call_operand.hbm [shape: f32[16,256], index: 5, kind: output, shape index: {}]
  %s6 = sld [smem:[#allocation0]]
  $region42: #{_mlp_pallas.1} parent=0
    _
  %s8 = ssub.s32 1, %s6
  %s9 = scalar_select 0, %s8, %s6
  $region1: #{_mlp_pallas.1} parent=0
    #allocation2 [shape = 'u8[16384]{0}', space=vmem, size = 0x4000, scoped, tag = 'input window, operand 0, single buffered']
    #allocation3 [shape = 's32[1]{0}', space=sflag, size = 0x4, scoped, tag = 'scoped memory for _mlp_pallas.1']
    #allocation4 [shape = 's32[1]{0}', space=sflag, size = 0x4, scoped, tag = 'scoped memory for _mlp_pallas.1']
    #allocation5 [shape = 'u8[524288]{0}', space=vmem, size = 0x80000, scoped, tag = 'input window, operand 1, single buffered']
    #allocation6 [shape = 's32[1]{0}', space=sflag, size = 0x4, scoped, tag = 'scoped memory for _mlp_pallas.1']
    #allocation7 [shape = 'u8[524288]{0}', space=vmem, size = 0x80000, scoped, tag = 'input window, operand 3, single buffered']
    #allocation8 [shape = 'u8[16384]{0}', space=vmem, size = 0x4000, scoped, tag = 'output window, operand 0, single buffered']
    %10 = vsyncpa [#allocation3], 0
    %11 = vsyncpa [#allocation6], 0
    %12 = vsyncpa [#allocation4], 0
    // Predicated region
    $region2: #{_mlp_pallas.1} parent=1 // pred_check
      _
    $region3: #{_mlp_pallas.1} parent=1 // pred_check_branch
      %14 = sbr.rel (0) target = $region5
    $region4: #{_mlp_pallas.1} parent=1 // pred_region
      %s16 = ssub.s32 512, 512
      %17 = vsyncadd [#allocation3], %s16
      %s18 = sshll.u32 [#allocation2], 4
      %s19 = int_to_ptr.vmem [resolvable:$true] %s18
      %24 = dma.hbm_to_vmem [thread:$0]  %s0, 512, %s19, [#allocation3], 256, 256, 16
    $region5: #{_mlp_pallas.1} parent=1 // pred_fallthru
      _
    // Predicated region
    $region6: #{_mlp_pallas.1} parent=1 // pred_check
      _
    $region7: #{_mlp_pallas.1} parent=1 // pred_check_branch
      %26 = sbr.rel (0) target = $region9
    $region8: #{_mlp_pallas.1} parent=1 // pred_region
      %s28 = ssub.s32 16384, 16384
      %29 = vsyncadd [#allocation6], %s28
      %s30 = sshll.u32 [#allocation5], 4
      %s31 = int_to_ptr.vmem [resolvable:$true] %s30
      %36 = dma.hbm_to_vmem [thread:$0]  %s1, 16384, %s31, [#allocation6], 512, 512, 32
    $region9: #{_mlp_pallas.1} parent=1 // pred_fallthru
      _
    // Predicated region
    $region10: #{_mlp_pallas.1} parent=1 // pred_check
      _
    $region11: #{_mlp_pallas.1} parent=1 // pred_check_branch
      %38 = sbr.rel (0) target = $region13
    $region12: #{_mlp_pallas.1} parent=1 // pred_region
      _
    $region13: #{_mlp_pallas.1} parent=1 // pred_fallthru
      _
    // Predicated region
    $region14: #{_mlp_pallas.1} parent=1 // pred_check
      _
    $region15: #{_mlp_pallas.1} parent=1 // pred_check_branch
      %40 = sbr.rel (0) target = $region17
    $region16: #{_mlp_pallas.1} parent=1 // pred_region
      %s42 = ssub.s32 16384, 16384
      %43 = vsyncadd [#allocation6], %s42
      %s44 = sshll.u32 [#allocation7], 4
      %s45 = int_to_ptr.vmem [resolvable:$true] %s44
      %50 = dma.hbm_to_vmem [thread:$0]  %s3, 16384, %s45, [#allocation6], 256, 256, 16
    $region17: #{_mlp_pallas.1} parent=1 // pred_fallthru
      _
    // Predicated region
    $region18: #{_mlp_pallas.1} parent=1 // pred_check
      _
    $region19: #{_mlp_pallas.1} parent=1 // pred_check_branch
      %52 = sbr.rel (0) target = $region21
    $region20: #{_mlp_pallas.1} parent=1 // pred_region
      _
    $region21: #{_mlp_pallas.1} parent=1 // pred_fallthru
      _
    // Predicated region
    $region22: #{_mlp_pallas.1} parent=1 // pred_check
      _
    $region23: #{_mlp_pallas.1} parent=1 // pred_check_branch
      %54 = sbr.rel (0) target = $region25
    $region24: #{_mlp_pallas.1} parent=1 // pred_region
      %55 = dma.done [#allocation3], 512
    $region25: #{_mlp_pallas.1} parent=1 // pred_fallthru
      _
    // Predicated region
    $region26: #{_mlp_pallas.1} parent=1 // pred_check
      _
    $region27: #{_mlp_pallas.1} parent=1 // pred_check_branch
      %57 = sbr.rel (0) target = $region29
    $region28: #{_mlp_pallas.1} parent=1 // pred_region
      %58 = dma.done [#allocation6], 16384
    $region29: #{_mlp_pallas.1} parent=1 // pred_fallthru
      _
    // Predicated region
    $region30: #{_mlp_pallas.1} parent=1 // pred_check
      _
    $region31: #{_mlp_pallas.1} parent=1 // pred_check_branch
      %60 = sbr.rel (0) target = $region33
    $region32: #{_mlp_pallas.1} parent=1 // pred_region
      %61 = dma.done [#allocation6], 16384
    $region33: #{_mlp_pallas.1} parent=1 // pred_fallthru
      _
    %v62 = vld [vmem:[#allocation2] sm:$0xff]
    %v63 = vld [vmem:[#allocation2 + $0x8] sm:$0xff]
    %v64 = vld [vmem:[#allocation2 + $0x10] sm:$0xff]
    %v65 = vld [vmem:[#allocation2 + $0x18] sm:$0xff]
    %v66 = vld [vmem:[#allocation5] sm:$0xff]
    %v67 = vld [vmem:[#allocation5 + $0x8] sm:$0xff]
    %v68 = vld [vmem:[#allocation5 + $0x10] sm:$0xff]
    %v69 = vld [vmem:[#allocation5 + $0x18] sm:$0xff]
    %v70 = vld [vmem:[#allocation5 + $0x20] sm:$0xff]
    %v71 = vld [vmem:[#allocation5 + $0x28] sm:$0xff]
    %v72 = vld [vmem:[#allocation5 + $0x30] sm:$0xff]
    %v73 = vld [vmem:[#allocation5 + $0x38] sm:$0xff]
    %v74 = vld [vmem:[#allocation5 + $0x40] sm:$0xff]
    %v75 = vld [vmem:[#allocation5 + $0x48] sm:$0xff]
    %v76 = vld [vmem:[#allocation5 + $0x50] sm:$0xff]
    %v77 = vld [vmem:[#allocation5 + $0x58] sm:$0xff]
    %v78 = vld [vmem:[#allocation5 + $0x60] sm:$0xff]
    %v79 = vld [vmem:[#allocation5 + $0x68] sm:$0xff]
    %v80 = vld [vmem:[#allocation5 + $0x70] sm:$0xff]
    %v81 = vld [vmem:[#allocation5 + $0x78] sm:$0xff]
    %v82 = vld [vmem:[#allocation5 + $0x80] sm:$0xff]
    %v83 = vld [vmem:[#allocation5 + $0x88] sm:$0xff]
    %v84 = vld [vmem:[#allocation5 + $0x90] sm:$0xff]
    %v85 = vld [vmem:[#allocation5 + $0x98] sm:$0xff]
    %v86 = vld [vmem:[#allocation5 + $0xa0] sm:$0xff]
    %v87 = vld [vmem:[#allocation5 + $0xa8] sm:$0xff]
    %v88 = vld [vmem:[#allocation5 + $0xb0] sm:$0xff]
    %v89 = vld [vmem:[#allocation5 + $0xb8] sm:$0xff]
    %v90 = vld [vmem:[#allocation5 + $0xc0] sm:$0xff]
    %v91 = vld [vmem:[#allocation5 + $0xc8] sm:$0xff]
    %v92 = vld [vmem:[#allocation5 + $0xd0] sm:$0xff]
    %v93 = vld [vmem:[#allocation5 + $0xd8] sm:$0xff]
    %v94 = vld [vmem:[#allocation5 + $0xe0] sm:$0xff]
    %v95 = vld [vmem:[#allocation5 + $0xe8] sm:$0xff]
    %v96 = vld [vmem:[#allocation5 + $0xf0] sm:$0xff]
    %v97 = vld [vmem:[#allocation5 + $0xf8] sm:$0xff]
    %v98 = vld [vmem:[#allocation5 + $0x100] sm:$0xff]
    %v99 = vld [vmem:[#allocation5 + $0x108] sm:$0xff]
    %v100 = vld [vmem:[#allocation5 + $0x110] sm:$0xff]
    %v101 = vld [vmem:[#allocation5 + $0x118] sm:$0xff]
    %v102 = vld [vmem:[#allocation5 + $0x120] sm:$0xff]
    %v103 = vld [vmem:[#allocation5 + $0x128] sm:$0xff]
    %v104 = vld [vmem:[#allocation5 + $0x130] sm:$0xff]
    %v105 = vld [vmem:[#allocation5 + $0x138] sm:$0xff]
    %v106 = vld [vmem:[#allocation5 + $0x140] sm:$0xff]
    %v107 = vld [vmem:[#allocation5 + $0x148] sm:$0xff]
    %v108 = vld [vmem:[#allocation5 + $0x150] sm:$0xff]
    %v109 = vld [vmem:[#allocation5 + $0x158] sm:$0xff]
    %v110 = vld [vmem:[#allocation5 + $0x160] sm:$0xff]
    %v111 = vld [vmem:[#allocation5 + $0x168] sm:$0xff]
    %v112 = vld [vmem:[#allocation5 + $0x170] sm:$0xff]
    %v113 = vld [vmem:[#allocation5 + $0x178] sm:$0xff]
    %v114 = vld [vmem:[#allocation5 + $0x180] sm:$0xff]
    %v115 = vld [vmem:[#allocation5 + $0x188] sm:$0xff]
    %v116 = vld [vmem:[#allocation5 + $0x190] sm:$0xff]
    %v117 = vld [vmem:[#allocation5 + $0x198] sm:$0xff]
    %v118 = vld [vmem:[#allocation5 + $0x1a0] sm:$0xff]
    %v119 = vld [vmem:[#allocation5 + $0x1a8] sm:$0xff]
    %v120 = vld [vmem:[#allocation5 + $0x1b0] sm:$0xff]
    %v121 = vld [vmem:[#allocation5 + $0x1b8] sm:$0xff]
    %v122 = vld [vmem:[#allocation5 + $0x1c0] sm:$0xff]
    %v123 = vld [vmem:[#allocation5 + $0x1c8] sm:$0xff]
    %v124 = vld [vmem:[#allocation5 + $0x1d0] sm:$0xff]
    %v125 = vld [vmem:[#allocation5 + $0x1d8] sm:$0xff]
    %v126 = vld [vmem:[#allocation5 + $0x1e0] sm:$0xff]
    %v127 = vld [vmem:[#allocation5 + $0x1e8] sm:$0xff]
    %v128 = vld [vmem:[#allocation5 + $0x1f0] sm:$0xff]
    %v129 = vld [vmem:[#allocation5 + $0x1f8] sm:$0xff]
    %v130 = vld [vmem:[#allocation5 + $0x200] sm:$0xff]
    %v131 = vld [vmem:[#allocation5 + $0x208] sm:$0xff]
    %v132 = vld [vmem:[#allocation5 + $0x210] sm:$0xff]
    %v133 = vld [vmem:[#allocation5 + $0x218] sm:$0xff]
    %v134 = vld [vmem:[#allocation5 + $0x220] sm:$0xff]
    %v135 = vld [vmem:[#allocation5 + $0x228] sm:$0xff]
    %v136 = vld [vmem:[#allocation5 + $0x230] sm:$0xff]
    %v137 = vld [vmem:[#allocation5 + $0x238] sm:$0xff]
    %v138 = vld [vmem:[#allocation5 + $0x240] sm:$0xff]
    %v139 = vld [vmem:[#allocation5 + $0x248] sm:$0xff]
    %v140 = vld [vmem:[#allocation5 + $0x250] sm:$0xff]
    %v141 = vld [vmem:[#allocation5 + $0x258] sm:$0xff]
    %v142 = vld [vmem:[#allocation5 + $0x260] sm:$0xff]
    %v143 = vld [vmem:[#allocation5 + $0x268] sm:$0xff]
    %v144 = vld [vmem:[#allocation5 + $0x270] sm:$0xff]
    %v145 = vld [vmem:[#allocation5 + $0x278] sm:$0xff]
    %v146 = vld [vmem:[#allocation5 + $0x280] sm:$0xff]
    %v147 = vld [vmem:[#allocation5 + $0x288] sm:$0xff]
    %v148 = vld [vmem:[#allocation5 + $0x290] sm:$0xff]
    %v149 = vld [vmem:[#allocation5 + $0x298] sm:$0xff]
    %v150 = vld [vmem:[#allocation5 + $0x2a0] sm:$0xff]
    %v151 = vld [vmem:[#allocation5 + $0x2a8] sm:$0xff]
    %v152 = vld [vmem:[#allocation5 + $0x2b0] sm:$0xff]
    %v153 = vld [vmem:[#allocation5 + $0x2b8] sm:$0xff]
    %v154 = vld [vmem:[#allocation5 + $0x2c0] sm:$0xff]
    %v155 = vld [vmem:[#allocation5 + $0x2c8] sm:$0xff]
    %v156 = vld [vmem:[#allocation5 + $0x2d0] sm:$0xff]
    %v157 = vld [vmem:[#allocation5 + $0x2d8] sm:$0xff]
    %v158 = vld [vmem:[#allocation5 + $0x2e0] sm:$0xff]
    %v159 = vld [vmem:[#allocation5 + $0x2e8] sm:$0xff]
    %v160 = vld [vmem:[#allocation5 + $0x2f0] sm:$0xff]
    %v161 = vld [vmem:[#allocation5 + $0x2f8] sm:$0xff]
    %v162 = vld [vmem:[#allocation5 + $0x300] sm:$0xff]
    %v163 = vld [vmem:[#allocation5 + $0x308] sm:$0xff]
    %v164 = vld [vmem:[#allocation5 + $0x310] sm:$0xff]
    %v165 = vld [vmem:[#allocation5 + $0x318] sm:$0xff]
    %v166 = vld [vmem:[#allocation5 + $0x320] sm:$0xff]
    %v167 = vld [vmem:[#allocation5 + $0x328] sm:$0xff]
    %v168 = vld [vmem:[#allocation5 + $0x330] sm:$0xff]
    %v169 = vld [vmem:[#allocation5 + $0x338] sm:$0xff]
    %v170 = vld [vmem:[#allocation5 + $0x340] sm:$0xff]
    %v171 = vld [vmem:[#allocation5 + $0x348] sm:$0xff]
    %v172 = vld [vmem:[#allocation5 + $0x350] sm:$0xff]
    %v173 = vld [vmem:[#allocation5 + $0x358] sm:$0xff]
    %v174 = vld [vmem:[#allocation5 + $0x360] sm:$0xff]
    %v175 = vld [vmem:[#allocation5 + $0x368] sm:$0xff]
    %v176 = vld [vmem:[#allocation5 + $0x370] sm:$0xff]
    %v177 = vld [vmem:[#allocation5 + $0x378] sm:$0xff]
    %v178 = vld [vmem:[#allocation5 + $0x380] sm:$0xff]
    %v179 = vld [vmem:[#allocation5 + $0x388] sm:$0xff]
    %v180 = vld [vmem:[#allocation5 + $0x390] sm:$0xff]
    %v181 = vld [vmem:[#allocation5 + $0x398] sm:$0xff]
    %v182 = vld [vmem:[#allocation5 + $0x3a0] sm:$0xff]
    %v183 = vld [vmem:[#allocation5 + $0x3a8] sm:$0xff]
    %v184 = vld [vmem:[#allocation5 + $0x3b0] sm:$0xff]
    %v185 = vld [vmem:[#allocation5 + $0x3b8] sm:$0xff]
    %v186 = vld [vmem:[#allocation5 + $0x3c0] sm:$0xff]
    %v187 = vld [vmem:[#allocation5 + $0x3c8] sm:$0xff]
    %v188 = vld [vmem:[#allocation5 + $0x3d0] sm:$0xff]
    %v189 = vld [vmem:[#allocation5 + $0x3d8] sm:$0xff]
    %v190 = vld [vmem:[#allocation5 + $0x3e0] sm:$0xff]
    %v191 = vld [vmem:[#allocation5 + $0x3e8] sm:$0xff]
    %v192 = vld [vmem:[#allocation5 + $0x3f0] sm:$0xff]
    %v193 = vld [vmem:[#allocation5 + $0x3f8] sm:$0xff]
    %v194 = vld [vmem:[%s2] sm:$0xf]
    %v196 = vlaneseq
    %v197 = vshrl.u32 %v196, 7
    %v198 = vsub.s32 0, %v197
    %v199 = vrot.slane %v194, %v198
    %v200 = vlaneseq
    %v201 = vshrl.u32 %v200, 7
    %v202 = vsub.s32 1, %v201
    %v203 = vrot.slane %v194, %v202
    %v204 = vlaneseq
    %v205 = vshrl.u32 %v204, 7
    %v206 = vsub.s32 2, %v205
    %v207 = vrot.slane %v194, %v206
    %v208 = vlaneseq
    %v209 = vshrl.u32 %v208, 7
    %v210 = vsub.s32 3, %v209
    %v211 = vrot.slane %v194, %v210
    %216 = vmatprep.subr.mxu0 %v127
    %217 = vmatpush1.msra.mxu0 %v126
    %218 = vmatprep.subr.mxu0 %v123
    %219 = vmatpush1.msra.mxu0 %v122
    %220 = vmatprep.subr.mxu0 %v119
    %221 = vmatpush1.msra.mxu0 %v118
    %222 = vmatprep.subr.mxu0 %v115
    %223 = vmatpush1.msra.mxu0 %v114
    %224 = vmatprep.subr.mxu0 %v111
    %225 = vmatpush1.msra.mxu0 %v110
    %226 = vmatprep.subr.mxu0 %v107
    %227 = vmatpush1.msra.mxu0 %v106
    %228 = vmatprep.subr.mxu0 %v103
    %229 = vmatpush1.msra.mxu0 %v102
    %230 = vmatprep.subr.mxu0 %v99
    %231 = vmatpush1.msra.mxu0 %v98
    %232 = vmatprep.subr.mxu0 %v95
    %233 = vmatpush1.msra.mxu0 %v94
    %234 = vmatprep.subr.mxu0 %v91
    %235 = vmatpush1.msra.mxu0 %v90
    %236 = vmatprep.subr.mxu0 %v87
    %237 = vmatpush1.msra.mxu0 %v86
    %238 = vmatprep.subr.mxu0 %v83
    %239 = vmatpush1.msra.mxu0 %v82
    %240 = vmatprep.subr.mxu0 %v79
    %241 = vmatpush1.msra.mxu0 %v78
    %242 = vmatprep.subr.mxu0 %v75
    %243 = vmatpush1.msra.mxu0 %v74
    %244 = vmatprep.subr.mxu0 %v71
    %245 = vmatpush1.msra.mxu0 %v70
    %246 = vmatprep.subr.mxu0 %v67
    %247 = vmatpush1.msra.mxu0 %v66
    %248 = vmatprep.subr.mxu0 %v191
    %249 = vmatpush2.msra.mxu0 %v190
    %250 = vmatprep.subr.mxu0 %v187
    %251 = vmatpush2.msra.mxu0 %v186
    %252 = vmatprep.subr.mxu0 %v183
    %253 = vmatpush2.msra.mxu0 %v182
    %254 = vmatprep.subr.mxu0 %v179
    %255 = vmatpush2.msra.mxu0 %v178
    %256 = vmatprep.subr.mxu0 %v175
    %257 = vmatpush2.msra.mxu0 %v174
    %258 = vmatprep.subr.mxu0 %v171
    %259 = vmatpush2.msra.mxu0 %v170
    %260 = vmatprep.subr.mxu0 %v167
    %261 = vmatpush2.msra.mxu0 %v166
    %262 = vmatprep.subr.mxu0 %v163
    %263 = vmatpush2.msra.mxu0 %v162
    %264 = vmatprep.subr.mxu0 %v159
    %265 = vmatpush2.msra.mxu0 %v158
    %266 = vmatprep.subr.mxu0 %v155
    %267 = vmatpush2.msra.mxu0 %v154
    %268 = vmatprep.subr.mxu0 %v151
    %269 = vmatpush2.msra.mxu0 %v150
    %270 = vmatprep.subr.mxu0 %v147
    %271 = vmatpush2.msra.mxu0 %v146
    %272 = vmatprep.subr.mxu0 %v143
    %273 = vmatpush2.msra.mxu0 %v142
    %274 = vmatprep.subr.mxu0 %v139
    %275 = vmatpush2.msra.mxu0 %v138
    %276 = vmatprep.subr.mxu0 %v135
    %277 = vmatpush2.msra.mxu0 %v134
    %278 = vmatprep.subr.mxu0 %v131
    %279 = vmatpush2.msra.mxu0 %v130
    %280 = vmatprep.mubr.f32.mxu0 %v63
    %281 = vmatmul.mubr.f32.gmra.mxu0 %v62
    %v282 = vpop.f32.mrf.mxu0
    %v283 = vadd.f32 %v199, %v282
    %v284 = vpop.f32.mrf.mxu0
    %v285 = vadd.f32 %v203, %v284
    %286 = vmatprep.mubr.f32.mxu0 %v65
    %287 = vmatmul.mubr.f32.gmra.mxu0 %v64
    %v288 = vpop.f32.mrf.mxu0
    %v289 = vadd.f32 %v199, %v288
    %v290 = vpop.f32.mrf.mxu0
    %v291 = vadd.f32 %v203, %v290
    %292 = vdwg.mxu0
    %293 = vmatprep.subr.mxu0 %v129
    %294 = vmatpush1.msra.mxu0 %v128
    %295 = vmatprep.subr.mxu0 %v125
    %296 = vmatpush1.msra.mxu0 %v124
    %297 = vmatprep.subr.mxu0 %v121
    %298 = vmatpush1.msra.mxu0 %v120
    %299 = vmatprep.subr.mxu0 %v117
    %300 = vmatpush1.msra.mxu0 %v116
    %301 = vmatprep.subr.mxu0 %v113
    %302 = vmatpush1.msra.mxu0 %v112
    %303 = vmatprep.subr.mxu0 %v109
    %304 = vmatpush1.msra.mxu0 %v108
    %305 = vmatprep.subr.mxu0 %v105
    %306 = vmatpush1.msra.mxu0 %v104
    %307 = vmatprep.subr.mxu0 %v101
    %308 = vmatpush1.msra.mxu0 %v100
    %309 = vmatprep.subr.mxu0 %v97
    %310 = vmatpush1.msra.mxu0 %v96
    %311 = vmatprep.subr.mxu0 %v93
    %312 = vmatpush1.msra.mxu0 %v92
    %313 = vmatprep.subr.mxu0 %v89
    %314 = vmatpush1.msra.mxu0 %v88
    %315 = vmatprep.subr.mxu0 %v85
    %316 = vmatpush1.msra.mxu0 %v84
    %317 = vmatprep.subr.mxu0 %v81
    %318 = vmatpush1.msra.mxu0 %v80
    %319 = vmatprep.subr.mxu0 %v77
    %320 = vmatpush1.msra.mxu0 %v76
    %321 = vmatprep.subr.mxu0 %v73
    %322 = vmatpush1.msra.mxu0 %v72
    %323 = vmatprep.subr.mxu0 %v69
    %324 = vmatpush1.msra.mxu0 %v68
    %325 = vmatprep.subr.mxu0 %v193
    %326 = vmatpush2.msra.mxu0 %v192
    %327 = vmatprep.subr.mxu0 %v189
    %328 = vmatpush2.msra.mxu0 %v188
    %329 = vmatprep.subr.mxu0 %v185
    %330 = vmatpush2.msra.mxu0 %v184
    %331 = vmatprep.subr.mxu0 %v181
    %332 = vmatpush2.msra.mxu0 %v180
    %333 = vmatprep.subr.mxu0 %v177
    %334 = vmatpush2.msra.mxu0 %v176
    %335 = vmatprep.subr.mxu0 %v173
    %336 = vmatpush2.msra.mxu0 %v172
    %337 = vmatprep.subr.mxu0 %v169
    %338 = vmatpush2.msra.mxu0 %v168
    %339 = vmatprep.subr.mxu0 %v165
    %340 = vmatpush2.msra.mxu0 %v164
    %341 = vmatprep.subr.mxu0 %v161
    %342 = vmatpush2.msra.mxu0 %v160
    %343 = vmatprep.subr.mxu0 %v157
    %344 = vmatpush2.msra.mxu0 %v156
    %345 = vmatprep.subr.mxu0 %v153
    %346 = vmatpush2.msra.mxu0 %v152
    %347 = vmatprep.subr.mxu0 %v149
    %348 = vmatpush2.msra.mxu0 %v148
    %349 = vmatprep.subr.mxu0 %v145
    %350 = vmatpush2.msra.mxu0 %v144
    %351 = vmatprep.subr.mxu0 %v141
    %352 = vmatpush2.msra.mxu0 %v140
    %353 = vmatprep.subr.mxu0 %v137
    %354 = vmatpush2.msra.mxu0 %v136
    %355 = vmatprep.subr.mxu0 %v133
    %356 = vmatpush2.msra.mxu0 %v132
    %357 = vmatprep.mubr.f32.mxu0 %v63
    %358 = vmatmul.mubr.f32.gmra.mxu0 %v62
    %v359 = vpop.f32.mrf.mxu0
    %v360 = vadd.f32 %v207, %v359
    %v361 = vpop.f32.mrf.mxu0
    %v362 = vadd.f32 %v211, %v361
    %363 = vmatprep.mubr.f32.mxu0 %v65
    %364 = vmatmul.mubr.f32.gmra.mxu0 %v64
    %v365 = vpop.f32.mrf.mxu0
    %v366 = vadd.f32 %v207, %v365
    %v367 = vpop.f32.mrf.mxu0
    %v368 = vadd.f32 %v211, %v367
    %369 = vdwg.mxu0
    %v370 = vmul.f32 %v283, 0.5
    %v371 = vmul.f32 %v285, 0.5
    %v372 = vmul.f32 %v360, 0.5
    %v373 = vmul.f32 %v362, 0.5
    %v374 = vmul.f32 %v289, 0.5
    %v375 = vmul.f32 %v291, 0.5
    %v376 = vmul.f32 %v366, 0.5
    %v377 = vmul.f32 %v368, 0.5
    %v378 = vmul.f32 %v283, 0.70710677
    %v379 = vmul.f32 %v285, 0.70710677
    %v380 = vmul.f32 %v360, 0.70710677
    %v381 = vmul.f32 %v362, 0.70710677
    %v382 = vmul.f32 %v289, 0.70710677
    %v383 = vmul.f32 %v291, 0.70710677
    %v384 = vmul.f32 %v366, 0.70710677
    %v385 = vmul.f32 %v368, 0.70710677
    %v386 = verf.f32.pop %v378
    %v387 = verf.f32.pop %v379
    %v388 = verf.f32.pop %v380
    %v389 = verf.f32.pop %v381
    %v390 = verf.f32.pop %v382
    %v391 = verf.f32.pop %v383
    %v392 = verf.f32.pop %v384
    %v393 = verf.f32.pop %v385
    %v394 = vadd.f32 %v386, 1.0
    %v395 = vadd.f32 %v387, 1.0
    %v396 = vadd.f32 %v388, 1.0
    %v397 = vadd.f32 %v389, 1.0
    %v398 = vadd.f32 %v390, 1.0
    %v399 = vadd.f32 %v391, 1.0
    %v400 = vadd.f32 %v392, 1.0
    %v401 = vadd.f32 %v393, 1.0
    %v402 = vmul.f32 %v370, %v394
    %v403 = vmul.f32 %v371, %v395
    %v404 = vmul.f32 %v372, %v396
    %v405 = vmul.f32 %v373, %v397
    %v406 = vmul.f32 %v374, %v398
    %v407 = vmul.f32 %v375, %v399
    %v408 = vmul.f32 %v376, %v400
    %v409 = vmul.f32 %v377, %v401
    %v410 = vld [vmem:[#allocation7] sm:$0xff]
    %v411 = vld [vmem:[#allocation7 + $0x8] sm:$0xff]
    %v412 = vld [vmem:[#allocation7 + $0x10] sm:$0xff]
    %v413 = vld [vmem:[#allocation7 + $0x18] sm:$0xff]
    %v414 = vld [vmem:[#allocation7 + $0x20] sm:$0xff]
    %v415 = vld [vmem:[#allocation7 + $0x28] sm:$0xff]
    %v416 = vld [vmem:[#allocation7 + $0x30] sm:$0xff]
    %v417 = vld [vmem:[#allocation7 + $0x38] sm:$0xff]
    %v418 = vld [vmem:[#allocation7 + $0x40] sm:$0xff]
    %v419 = vld [vmem:[#allocation7 + $0x48] sm:$0xff]
    %v420 = vld [vmem:[#allocation7 + $0x50] sm:$0xff]
    %v421 = vld [vmem:[#allocation7 + $0x58] sm:$0xff]
    %v422 = vld [vmem:[#allocation7 + $0x60] sm:$0xff]
    %v423 = vld [vmem:[#allocation7 + $0x68] sm:$0xff]
    %v424 = vld [vmem:[#allocation7 + $0x70] sm:$0xff]
    %v425 = vld [vmem:[#allocation7 + $0x78] sm:$0xff]
    %v426 = vld [vmem:[#allocation7 + $0x80] sm:$0xff]
    %v427 = vld [vmem:[#allocation7 + $0x88] sm:$0xff]
    %v428 = vld [vmem:[#allocation7 + $0x90] sm:$0xff]
    %v429 = vld [vmem:[#allocation7 + $0x98] sm:$0xff]
    %v430 = vld [vmem:[#allocation7 + $0xa0] sm:$0xff]
    %v431 = vld [vmem:[#allocation7 + $0xa8] sm:$0xff]
    %v432 = vld [vmem:[#allocation7 + $0xb0] sm:$0xff]
    %v433 = vld [vmem:[#allocation7 + $0xb8] sm:$0xff]
    %v434 = vld [vmem:[#allocation7 + $0xc0] sm:$0xff]
    %v435 = vld [vmem:[#allocation7 + $0xc8] sm:$0xff]
    %v436 = vld [vmem:[#allocation7 + $0xd0] sm:$0xff]
    %v437 = vld [vmem:[#allocation7 + $0xd8] sm:$0xff]
    %v438 = vld [vmem:[#allocation7 + $0xe0] sm:$0xff]
    %v439 = vld [vmem:[#allocation7 + $0xe8] sm:$0xff]
    %v440 = vld [vmem:[#allocation7 + $0xf0] sm:$0xff]
    %v441 = vld [vmem:[#allocation7 + $0xf8] sm:$0xff]
    %v442 = vld [vmem:[#allocation7 + $0x100] sm:$0xff]
    %v443 = vld [vmem:[#allocation7 + $0x108] sm:$0xff]
    %v444 = vld [vmem:[#allocation7 + $0x110] sm:$0xff]
    %v445 = vld [vmem:[#allocation7 + $0x118] sm:$0xff]
    %v446 = vld [vmem:[#allocation7 + $0x120] sm:$0xff]
    %v447 = vld [vmem:[#allocation7 + $0x128] sm:$0xff]
    %v448 = vld [vmem:[#allocation7 + $0x130] sm:$0xff]
    %v449 = vld [vmem:[#allocation7 + $0x138] sm:$0xff]
    %v450 = vld [vmem:[#allocation7 + $0x140] sm:$0xff]
    %v451 = vld [vmem:[#allocation7 + $0x148] sm:$0xff]
    %v452 = vld [vmem:[#allocation7 + $0x150] sm:$0xff]
    %v453 = vld [vmem:[#allocation7 + $0x158] sm:$0xff]
    %v454 = vld [vmem:[#allocation7 + $0x160] sm:$0xff]
    %v455 = vld [vmem:[#allocation7 + $0x168] sm:$0xff]
    %v456 = vld [vmem:[#allocation7 + $0x170] sm:$0xff]
    %v457 = vld [vmem:[#allocation7 + $0x178] sm:$0xff]
    %v458 = vld [vmem:[#allocation7 + $0x180] sm:$0xff]
    %v459 = vld [vmem:[#allocation7 + $0x188] sm:$0xff]
    %v460 = vld [vmem:[#allocation7 + $0x190] sm:$0xff]
    %v461 = vld [vmem:[#allocation7 + $0x198] sm:$0xff]
    %v462 = vld [vmem:[#allocation7 + $0x1a0] sm:$0xff]
    %v463 = vld [vmem:[#allocation7 + $0x1a8] sm:$0xff]
    %v464 = vld [vmem:[#allocation7 + $0x1b0] sm:$0xff]
    %v465 = vld [vmem:[#allocation7 + $0x1b8] sm:$0xff]
    %v466 = vld [vmem:[#allocation7 + $0x1c0] sm:$0xff]
    %v467 = vld [vmem:[#allocation7 + $0x1c8] sm:$0xff]
    %v468 = vld [vmem:[#allocation7 + $0x1d0] sm:$0xff]
    %v469 = vld [vmem:[#allocation7 + $0x1d8] sm:$0xff]
    %v470 = vld [vmem:[#allocation7 + $0x1e0] sm:$0xff]
    %v471 = vld [vmem:[#allocation7 + $0x1e8] sm:$0xff]
    %v472 = vld [vmem:[#allocation7 + $0x1f0] sm:$0xff]
    %v473 = vld [vmem:[#allocation7 + $0x1f8] sm:$0xff]
    %v474 = vld [vmem:[#allocation7 + $0x200] sm:$0xff]
    %v475 = vld [vmem:[#allocation7 + $0x208] sm:$0xff]
    %v476 = vld [vmem:[#allocation7 + $0x210] sm:$0xff]
    %v477 = vld [vmem:[#allocation7 + $0x218] sm:$0xff]
    %v478 = vld [vmem:[#allocation7 + $0x220] sm:$0xff]
    %v479 = vld [vmem:[#allocation7 + $0x228] sm:$0xff]
    %v480 = vld [vmem:[#allocation7 + $0x230] sm:$0xff]
    %v481 = vld [vmem:[#allocation7 + $0x238] sm:$0xff]
    %v482 = vld [vmem:[#allocation7 + $0x240] sm:$0xff]
    %v483 = vld [vmem:[#allocation7 + $0x248] sm:$0xff]
    %v484 = vld [vmem:[#allocation7 + $0x250] sm:$0xff]
    %v485 = vld [vmem:[#allocation7 + $0x258] sm:$0xff]
    %v486 = vld [vmem:[#allocation7 + $0x260] sm:$0xff]
    %v487 = vld [vmem:[#allocation7 + $0x268] sm:$0xff]
    %v488 = vld [vmem:[#allocation7 + $0x270] sm:$0xff]
    %v489 = vld [vmem:[#allocation7 + $0x278] sm:$0xff]
    %v490 = vld [vmem:[#allocation7 + $0x280] sm:$0xff]
    %v491 = vld [vmem:[#allocation7 + $0x288] sm:$0xff]
    %v492 = vld [vmem:[#allocation7 + $0x290] sm:$0xff]
    %v493 = vld [vmem:[#allocation7 + $0x298] sm:$0xff]
    %v494 = vld [vmem:[#allocation7 + $0x2a0] sm:$0xff]
    %v495 = vld [vmem:[#allocation7 + $0x2a8] sm:$0xff]
    %v496 = vld [vmem:[#allocation7 + $0x2b0] sm:$0xff]
    %v497 = vld [vmem:[#allocation7 + $0x2b8] sm:$0xff]
    %v498 = vld [vmem:[#allocation7 + $0x2c0] sm:$0xff]
    %v499 = vld [vmem:[#allocation7 + $0x2c8] sm:$0xff]
    %v500 = vld [vmem:[#allocation7 + $0x2d0] sm:$0xff]
    %v501 = vld [vmem:[#allocation7 + $0x2d8] sm:$0xff]
    %v502 = vld [vmem:[#allocation7 + $0x2e0] sm:$0xff]
    %v503 = vld [vmem:[#allocation7 + $0x2e8] sm:$0xff]
    %v504 = vld [vmem:[#allocation7 + $0x2f0] sm:$0xff]
    %v505 = vld [vmem:[#allocation7 + $0x2f8] sm:$0xff]
    %v506 = vld [vmem:[#allocation7 + $0x300] sm:$0xff]
    %v507 = vld [vmem:[#allocation7 + $0x308] sm:$0xff]
    %v508 = vld [vmem:[#allocation7 + $0x310] sm:$0xff]
    %v509 = vld [vmem:[#allocation7 + $0x318] sm:$0xff]
    %v510 = vld [vmem:[#allocation7 + $0x320] sm:$0xff]
    %v511 = vld [vmem:[#allocation7 + $0x328] sm:$0xff]
    %v512 = vld [vmem:[#allocation7 + $0x330] sm:$0xff]
    %v513 = vld [vmem:[#allocation7 + $0x338] sm:$0xff]
    %v514 = vld [vmem:[#allocation7 + $0x340] sm:$0xff]
    %v515 = vld [vmem:[#allocation7 + $0x348] sm:$0xff]
    %v516 = vld [vmem:[#allocation7 + $0x350] sm:$0xff]
    %v517 = vld [vmem:[#allocation7 + $0x358] sm:$0xff]
    %v518 = vld [vmem:[#allocation7 + $0x360] sm:$0xff]
    %v519 = vld [vmem:[#allocation7 + $0x368] sm:$0xff]
    %v520 = vld [vmem:[#allocation7 + $0x370] sm:$0xff]
    %v521 = vld [vmem:[#allocation7 + $0x378] sm:$0xff]
    %v522 = vld [vmem:[#allocation7 + $0x380] sm:$0xff]
    %v523 = vld [vmem:[#allocation7 + $0x388] sm:$0xff]
    %v524 = vld [vmem:[#allocation7 + $0x390] sm:$0xff]
    %v525 = vld [vmem:[#allocation7 + $0x398] sm:$0xff]
    %v526 = vld [vmem:[#allocation7 + $0x3a0] sm:$0xff]
    %v527 = vld [vmem:[#allocation7 + $0x3a8] sm:$0xff]
    %v528 = vld [vmem:[#allocation7 + $0x3b0] sm:$0xff]
    %v529 = vld [vmem:[#allocation7 + $0x3b8] sm:$0xff]
    %v530 = vld [vmem:[#allocation7 + $0x3c0] sm:$0xff]
    %v531 = vld [vmem:[#allocation7 + $0x3c8] sm:$0xff]
    %v532 = vld [vmem:[#allocation7 + $0x3d0] sm:$0xff]
    %v533 = vld [vmem:[#allocation7 + $0x3d8] sm:$0xff]
    %v534 = vld [vmem:[#allocation7 + $0x3e0] sm:$0xff]
    %v535 = vld [vmem:[#allocation7 + $0x3e8] sm:$0xff]
    %v536 = vld [vmem:[#allocation7 + $0x3f0] sm:$0xff]
    %v537 = vld [vmem:[#allocation7 + $0x3f8] sm:$0xff]
    %v538 = vld [vmem:[%s4] sm:$0x3]
    %v540 = vlaneseq
    %v541 = vshrl.u32 %v540, 7
    %v542 = vsub.s32 0, %v541
    %v543 = vrot.slane %v538, %v542
    %v544 = vlaneseq
    %v545 = vshrl.u32 %v544, 7
    %v546 = vsub.s32 1, %v545
    %v547 = vrot.slane %v538, %v546
    %550 = vmatprep.subr.mxu0 %v441
    %551 = vmatpush1.msra.mxu0 %v440
    %552 = vmatprep.subr.mxu0 %v439
    %553 = vmatpush1.msra.mxu0 %v438
    %554 = vmatprep.subr.mxu0 %v437
    %555 = vmatpush1.msra.mxu0 %v436
    %556 = vmatprep.subr.mxu0 %v435
    %557 = vmatpush1.msra.mxu0 %v434
    %558 = vmatprep.subr.mxu0 %v433
    %559 = vmatpush1.msra.mxu0 %v432
    %560 = vmatprep.subr.mxu0 %v431
    %561 = vmatpush1.msra.mxu0 %v430
    %562 = vmatprep.subr.mxu0 %v429
    %563 = vmatpush1.msra.mxu0 %v428
    %564 = vmatprep.subr.mxu0 %v427
    %565 = vmatpush1.msra.mxu0 %v426
    %566 = vmatprep.subr.mxu0 %v425
    %567 = vmatpush1.msra.mxu0 %v424
    %568 = vmatprep.subr.mxu0 %v423
    %569 = vmatpush1.msra.mxu0 %v422
    %570 = vmatprep.subr.mxu0 %v421
    %571 = vmatpush1.msra.mxu0 %v420
    %572 = vmatprep.subr.mxu0 %v419
    %573 = vmatpush1.msra.mxu0 %v418
    %574 = vmatprep.subr.mxu0 %v417
    %575 = vmatpush1.msra.mxu0 %v416
    %576 = vmatprep.subr.mxu0 %v415
    %577 = vmatpush1.msra.mxu0 %v414
    %578 = vmatprep.subr.mxu0 %v413
    %579 = vmatpush1.msra.mxu0 %v412
    %580 = vmatprep.subr.mxu0 %v411
    %581 = vmatpush1.msra.mxu0 %v410
    %582 = vmatprep.subr.mxu0 %v473
    %583 = vmatpush2.msra.mxu0 %v472
    %584 = vmatprep.subr.mxu0 %v471
    %585 = vmatpush2.msra.mxu0 %v470
    %586 = vmatprep.subr.mxu0 %v469
    %587 = vmatpush2.msra.mxu0 %v468
    %588 = vmatprep.subr.mxu0 %v467
    %589 = vmatpush2.msra.mxu0 %v466
    %590 = vmatprep.subr.mxu0 %v465
    %591 = vmatpush2.msra.mxu0 %v464
    %592 = vmatprep.subr.mxu0 %v463
    %593 = vmatpush2.msra.mxu0 %v462
    %594 = vmatprep.subr.mxu0 %v461
    %595 = vmatpush2.msra.mxu0 %v460
    %596 = vmatprep.subr.mxu0 %v459
    %597 = vmatpush2.msra.mxu0 %v458
    %598 = vmatprep.subr.mxu0 %v457
    %599 = vmatpush2.msra.mxu0 %v456
    %600 = vmatprep.subr.mxu0 %v455
    %601 = vmatpush2.msra.mxu0 %v454
    %602 = vmatprep.subr.mxu0 %v453
    %603 = vmatpush2.msra.mxu0 %v452
    %604 = vmatprep.subr.mxu0 %v451
    %605 = vmatpush2.msra.mxu0 %v450
    %606 = vmatprep.subr.mxu0 %v449
    %607 = vmatpush2.msra.mxu0 %v448
    %608 = vmatprep.subr.mxu0 %v447
    %609 = vmatpush2.msra.mxu0 %v446
    %610 = vmatprep.subr.mxu0 %v445
    %611 = vmatpush2.msra.mxu0 %v444
    %612 = vmatprep.subr.mxu0 %v443
    %613 = vmatpush2.msra.mxu0 %v442
    %614 = vmatprep.mubr.f32.mxu0 %v403
    %615 = vmatmul.mubr.f32.gmra.mxu0 %v402
    %v616 = vpop.f32.mrf.mxu0
    %v617 = vadd.f32 %v543, %v616
    %v618 = vpop.f32.mrf.mxu0
    %v619 = vadd.f32 %v547, %v618
    %620 = vmatprep.mubr.f32.mxu0 %v407
    %621 = vmatmul.mubr.f32.gmra.mxu0 %v406
    %v622 = vpop.f32.mrf.mxu0
    %v623 = vadd.f32 %v543, %v622
    %v624 = vpop.f32.mrf.mxu0
    %v625 = vadd.f32 %v547, %v624
    %626 = vdwg.mxu0
    %627 = vmatprep.subr.mxu0 %v505
    %628 = vmatpush1.msra.mxu0 %v504
    %629 = vmatprep.subr.mxu0 %v503
    %630 = vmatpush1.msra.mxu0 %v502
    %631 = vmatprep.subr.mxu0 %v501
    %632 = vmatpush1.msra.mxu0 %v500
    %633 = vmatprep.subr.mxu0 %v499
    %634 = vmatpush1.msra.mxu0 %v498
    %635 = vmatprep.subr.mxu0 %v497
    %636 = vmatpush1.msra.mxu0 %v496
    %637 = vmatprep.subr.mxu0 %v495
    %638 = vmatpush1.msra.mxu0 %v494
    %639 = vmatprep.subr.mxu0 %v493
    %640 = vmatpush1.msra.mxu0 %v492
    %641 = vmatprep.subr.mxu0 %v491
    %642 = vmatpush1.msra.mxu0 %v490
    %643 = vmatprep.subr.mxu0 %v489
    %644 = vmatpush1.msra.mxu0 %v488
    %645 = vmatprep.subr.mxu0 %v487
    %646 = vmatpush1.msra.mxu0 %v486
    %647 = vmatprep.subr.mxu0 %v485
    %648 = vmatpush1.msra.mxu0 %v484
    %649 = vmatprep.subr.mxu0 %v483
    %650 = vmatpush1.msra.mxu0 %v482
    %651 = vmatprep.subr.mxu0 %v481
    %652 = vmatpush1.msra.mxu0 %v480
    %653 = vmatprep.subr.mxu0 %v479
    %654 = vmatpush1.msra.mxu0 %v478
    %655 = vmatprep.subr.mxu0 %v477
    %656 = vmatpush1.msra.mxu0 %v476
    %657 = vmatprep.subr.mxu0 %v475
    %658 = vmatpush1.msra.mxu0 %v474
    %659 = vmatprep.subr.mxu0 %v537
    %660 = vmatpush2.msra.mxu0 %v536
    %661 = vmatprep.subr.mxu0 %v535
    %662 = vmatpush2.msra.mxu0 %v534
    %663 = vmatprep.subr.mxu0 %v533
    %664 = vmatpush2.msra.mxu0 %v532
    %665 = vmatprep.subr.mxu0 %v531
    %666 = vmatpush2.msra.mxu0 %v530
    %667 = vmatprep.subr.mxu0 %v529
    %668 = vmatpush2.msra.mxu0 %v528
    %669 = vmatprep.subr.mxu0 %v527
    %670 = vmatpush2.msra.mxu0 %v526
    %671 = vmatprep.subr.mxu0 %v525
    %672 = vmatpush2.msra.mxu0 %v524
    %673 = vmatprep.subr.mxu0 %v523
    %674 = vmatpush2.msra.mxu0 %v522
    %675 = vmatprep.subr.mxu0 %v521
    %676 = vmatpush2.msra.mxu0 %v520
    %677 = vmatprep.subr.mxu0 %v519
    %678 = vmatpush2.msra.mxu0 %v518
    %679 = vmatprep.subr.mxu0 %v517
    %680 = vmatpush2.msra.mxu0 %v516
    %681 = vmatprep.subr.mxu0 %v515
    %682 = vmatpush2.msra.mxu0 %v514
    %683 = vmatprep.subr.mxu0 %v513
    %684 = vmatpush2.msra.mxu0 %v512
    %685 = vmatprep.subr.mxu0 %v511
    %686 = vmatpush2.msra.mxu0 %v510
    %687 = vmatprep.subr.mxu0 %v509
    %688 = vmatpush2.msra.mxu0 %v508
    %689 = vmatprep.subr.mxu0 %v507
    %690 = vmatpush2.msra.mxu0 %v506
    %691 = vmatprep.mubr.f32.mxu0 %v405
    %692 = vmatmul.mubr.f32.gmra.mxu0 %v404
    %v693 = vpop.f32.mrf.mxu0
    %v694 = vadd.f32 %v617, %v693
    %v695 = vpop.f32.mrf.mxu0
    %v696 = vadd.f32 %v619, %v695
    %697 = vmatprep.mubr.f32.mxu0 %v409
    %698 = vmatmul.mubr.f32.gmra.mxu0 %v408
    %v699 = vpop.f32.mrf.mxu0
    %v700 = vadd.f32 %v623, %v699
    %v701 = vpop.f32.mrf.mxu0
    %v702 = vadd.f32 %v625, %v701
    %703 = vdwg.mxu0
    %704 = vst [vmem:[#allocation8] sm:$0xff] %v694
    %705 = vst [vmem:[#allocation8 + $0x8] sm:$0xff] %v696
    %706 = vst [vmem:[#allocation8 + $0x10] sm:$0xff] %v700
    %707 = vst [vmem:[#allocation8 + $0x18] sm:$0xff] %v702
    // Predicated region
    $region34: #{_mlp_pallas.1} parent=1 // pred_check
      _
    $region35: #{_mlp_pallas.1} parent=1 // pred_check_branch
      %709 = sbr.rel (0) target = $region37
    $region36: #{_mlp_pallas.1} parent=1 // pred_region
      %s711 = ssub.s32 512, 512
      %712 = vsyncadd [#allocation4], %s711
      %s713 = sshll.u32 [#allocation8], 4
      %s714 = int_to_ptr.vmem [resolvable:$true] %s713
      %719 = dma.vmem_to_hbm [thread:$0]  %s714, 512, %s5, [#allocation4], 256, 256, 16
    $region37: #{_mlp_pallas.1} parent=1 // pred_fallthru
      _
    // Predicated region
    $region38: #{_mlp_pallas.1} parent=1 // pred_check
      _
    $region39: #{_mlp_pallas.1} parent=1 // pred_check_branch
      %721 = sbr.rel (0) target = $region41
    $region40: #{_mlp_pallas.1} parent=1 // pred_region
      %722 = dma.done [#allocation4], 512
    $region41: #{_mlp_pallas.1} parent=1 // pred_fallthru
      _
    %723 = vsyncpa [#allocation3], 1
    %724 = vsyncpa [#allocation6], 1
    %725 = vsyncpa [#allocation4], 1

</llo_original>
